<compile_context>
chip_gen: v5e
topology: v5e:2x2
jax: 0.10.0
libtpu: 0.0.40
codegen_flags: <defaults>
</compile_context>

<pallas_src>
import functools

import jax
import jax.numpy as jnp
from jax.experimental import pallas as pl
from jax.experimental.pallas import tpu as pltpu

# ---------------- problem sizes (small, consistent with the module) ----------
N_OBJ = 8          # number of nodes / objects
N_PTS = 64         # points per object
DESP_DIM = 11      # descriptor: centroid(3), std(3), dims(3), volume(1), length(1)

PT_H1, PT_H2 = 32, 64
PT_OUT = 24                     # node_feature_dim - spatial_feature_dim (32 - 8)
SP_OUT = 8                      # spatial fc output
NODE_DIM = PT_OUT + SP_OUT      # 32 == cfg.model.node_feature_dim after concat

EDGE_REL_IN = 11                # relative descriptor dim (SGFN edge encoder)
EG_H1, EG_H2 = 32, 32
EDGE_DIM = 32                   # cfg.model.edge_feature_dim

CLS_H1, CLS_H2 = 64, 32         # PointNetCls hidden dims (shrunk from 512/256)
NUM_OBJ_CLS = 20
NUM_REL_CLS = 8
N_EDGE = 16

SLAB_LANES = 128
OUT_ROWS = N_OBJ + N_EDGE       # fused, lane-padded output slab rows
N_LANE = N_OBJ * N_PTS          # 512 point lanes (lane = point*8 + object)

# ----------------------- parameter slab layout (static) ----------------------
# Hand-packed (row_off, lane_off, height, width) blocks in a (184, 128) f32 slab.
#   pt1/pt2/pt3 are stored TRANSPOSED with the bias as an extra input column
#   (pt1/pt2 additionally emit a constant-one channel so the next bias folds too).
#   All other layers are stored as [W (din rows); b (1 row)] x dout lanes.
_BLOCKS = {
    'pt2': (0,    0, PT_H2 + 1,       PT_H1 + 1),    # (65, 33)
    'nc2': (0,   40, CLS_H1 + 1,      CLS_H2),       # (65, 32)
    'rc2': (0,   72, CLS_H1 + 1,      CLS_H2),       # (65, 32)
    'pt1': (0,  104, PT_H1 + 1,       4),            # (33,  4)
    'rc3': (0,  108, CLS_H2 + 1,      NUM_REL_CLS),  # (33,  8)
    'sp':  (0,  116, DESP_DIM + 1,    SP_OUT),       # (12,  8)
    'nc3': (40, 104, CLS_H2 + 1,      NUM_OBJ_CLS),  # (33, 20)
    'nc1': (80,   0, NODE_DIM + 1,    CLS_H1),       # (33, 64)
    'eg2': (80,  64, EG_H1 + 1,       EG_H2),        # (33, 32)
    'eg3': (80,  96, EG_H2 + 1,       EDGE_DIM),     # (33, 32)
    'rc1': (120,  0, EDGE_DIM + 1,    CLS_H1),       # (33, 64)
    'eg1': (120, 64, EDGE_REL_IN + 1, EG_H1),        # (12, 32)
    'pt3': (160,  0, PT_OUT,          PT_H2 + 1),    # (24, 65)
}
SLAB_ROWS = 184                                       # 184*128*4 B = 92 KiB (was 268 KiB)


def _check_layout():
    occ = set()
    for name, (r, c, h, w) in _BLOCKS.items():
        assert r + h <= SLAB_ROWS and c + w <= SLAB_LANES, name
        for rr in range(r, r + h):
            for cc in range(c, c + w):
                assert (rr, cc) not in occ, (name, rr, cc)
                occ.add((rr, cc))


_check_layout()


def pack_params(params):
    """Pack all (W, b) pairs into one tight f32 [SLAB_ROWS, 128] slab."""
    slab = jnp.zeros((SLAB_ROWS, SLAB_LANES), jnp.float32)
    blocks = {}

    # point MLP: transposed; bias folded as an extra input column; pt1/pt2 also emit
    # a constant-one output channel so the next layer's bias rides the MXU as well.
    w, b = params['pt1']                                   # (3,32), (1,32)
    a1 = jnp.zeros((PT_H1 + 1, 4), jnp.float32)
    a1 = a1.at[0:PT_H1, 0:3].set(w.T).at[0:PT_H1, 3].set(b[0]).at[PT_H1, 3].set(1.0)
    blocks['pt1'] = a1

    w, b = params['pt2']                                   # (32,64), (1,64)
    a2 = jnp.zeros((PT_H2 + 1, PT_H1 + 1), jnp.float32)
    a2 = a2.at[0:PT_H2, 0:PT_H1].set(w.T).at[0:PT_H2, PT_H1].set(b[0]).at[PT_H2, PT_H1].set(1.0)
    blocks['pt2'] = a2

    w, b = params['pt3']                                   # (64,24), (1,24)
    a3 = jnp.zeros((PT_OUT, PT_H2 + 1), jnp.float32)
    a3 = a3.at[:, 0:PT_H2].set(w.T).at[:, PT_H2].set(b[0])
    blocks['pt3'] = a3

    # spatial fc (8->8) stored at input rows 3..10 so the masked 11-wide descriptor
    # can be multiplied directly (zero rows kill cols 0..2).
    w, b = params['sp']
    spb = jnp.zeros((DESP_DIM + 1, SP_OUT), jnp.float32)
    spb = spb.at[3:DESP_DIM, :].set(w).at[DESP_DIM, :].set(b[0])
    blocks['sp'] = spb

    for name in ('nc1', 'nc2', 'nc3', 'eg1', 'eg2', 'eg3', 'rc1', 'rc2', 'rc3'):
        w, b = params[name]
        din, dout = w.shape
        blk = jnp.zeros((din + 1, dout), jnp.float32)
        blk = blk.at[0:din, :].set(w).at[din, :].set(b[0])
        blocks[name] = blk

    for name, blk in blocks.items():
        r, c, h, w = _BLOCKS[name]
        assert blk.shape == (h, w), (name, blk.shape, (h, w))
        slab = slab.at[r:r + h, c:c + w].set(blk)
    return slab


def _blk(slab_ref, name):
    """Static (zero-cost index math) carve-out of a layer's packed block."""
    r, c, h, w = _BLOCKS[name]
    return slab_ref[r:r + h, c:c + w]


def _wb(slab_ref, name):
    blk = _blk(slab_ref, name)
    return blk[:-1, :], blk[-1:, :]


# ----------------------------- fused Pallas kernel ---------------------------
def _sgfn_kernel(ei_ref, x0_ref, desp_ref, slab_ref, out_ref):
    f32 = jnp.float32
    dot = functools.partial(jnp.dot, preferred_element_type=f32)
    relu = lambda a: jnp.maximum(a, 0.0)

    # --- obj_encoder: lane-dense point MLP (channels on sublanes, points on lanes)
    # x0: (4, 512): rows 0..2 = xyz, row 3 = 1.0 (bias lane); lane = point*8 + object.
    x0 = x0_ref[...]
    h = relu(dot(_blk(slab_ref, 'pt1'), x0))          # (33, 512), row 32 == 1
    h = relu(dot(_blk(slab_ref, 'pt2'), h))           # (65, 512), row 64 == 1
    h = dot(_blk(slab_ref, 'pt3'), h)                 # (24, 512)

    # grouped max over each object's 64 points: stride-8 rotations stay inside an
    # object's lane set, so the doubling tree leaves every lane holding its group max.
    for s in (8, 16, 32, 64, 128, 256):
        h = jnp.maximum(h, pltpu.roll(h, shift=s, axis=1))
    lane = jax.lax.broadcasted_iota(jnp.int32, (N_OBJ, N_LANE), 1)
    obj = jax.lax.broadcasted_iota(jnp.int32, (N_OBJ, N_LANE), 0)
    sel = (lane == obj).astype(f32)                    # (8, 512): picks lane o for row o
    pt_feat = jax.lax.dot_general(sel, h, (((1,), (1,)), ((), ())),
                                  preferred_element_type=f32)          # (8, 24)

    # --- descriptor logs computed once, only on the columns consumed in log space ---
    desp = desp_ref[...]                               # (8, 11)
    col = jax.lax.broadcasted_iota(jnp.int32, (N_OBJ, DESP_DIM), 1)
    logd = jnp.log(jnp.where(col >= 6, desp, 1.0))

    # --- spatial encoder: Linear(8->8) on descriptor[:,3:] with log on cols 9:11 ---
    sp_in = jnp.where(col >= 9, logd, desp)            # zero weight rows kill cols 0:3
    w, b = _wb(slab_ref, 'sp')
    sp = dot(sp_in, w) + b                             # (8, 8)

    # --- obj_predictor: PointNetCls; first matmul split to skip the lane concat ---
    nblk = _blk(slab_ref, 'nc1')                       # (33, 64)
    y = relu(dot(pt_feat, nblk[0:PT_OUT, :]) + dot(sp, nblk[PT_OUT:NODE_DIM, :])
             + nblk[NODE_DIM:NODE_DIM + 1, :])
    w, b = _wb(slab_ref, 'nc2'); y = relu(dot(y, w) + b)
    w, b = _wb(slab_ref, 'nc3'); node_cls = dot(y, w) + b                 # (8, 20)

    # --- rel_encoder: edge gather via signed one-hot on the MXU -------------------
    # aug: centroid/std raw, dims/volume/length in log space, so
    # (onehot_subj - onehot_obj) @ aug == SGFN relative descriptor.
    aug = jnp.where(col >= 6, logd, desp)              # (8, 11)
    ei = ei_ref[...]                                   # (16, 2) int32
    nidx = jax.lax.broadcasted_iota(jnp.int32, (N_EDGE, N_OBJ), 1)
    sel_e = ((ei[:, 0:1] == nidx).astype(f32) - (ei[:, 1:2] == nidx).astype(f32))
    rel = dot(sel_e, aug)                              # (16, 11)

    w, b = _wb(slab_ref, 'eg1'); e = relu(dot(rel, w) + b)
    w, b = _wb(slab_ref, 'eg2'); e = relu(dot(e, w) + b)
    w, b = _wb(slab_ref, 'eg3'); e = dot(e, w) + b                        # (16, 32)

    # --- rel_predictor: PointNetRelCls (fc-relu-fc-relu-fc + log_softmax) ---------
    w, b = _wb(slab_ref, 'rc1'); z = relu(dot(e, w) + b)
    w, b = _wb(slab_ref, 'rc2'); z = relu(dot(z, w) + b)
    w, b = _wb(slab_ref, 'rc3'); logits = dot(z, w) + b                   # (16, 8)
    mx = jnp.max(logits, axis=1, keepdims=True)
    edge_cls = logits - (mx + jnp.log(jnp.sum(jnp.exp(logits - mx), axis=1,
                                              keepdims=True)))

    # --- single unmasked full-tile (24,128) store ---------------------------------
    # lane padding done with tiny [I | 0] matmuls (deterministic lowering, no masked vst)
    ncl = jax.lax.broadcasted_iota(jnp.int32, (NUM_OBJ_CLS, SLAB_LANES), 1)
    ncr = jax.lax.broadcasted_iota(jnp.int32, (NUM_OBJ_CLS, SLAB_LANES), 0)
    pad_n = (ncl == ncr).astype(f32)                   # (20, 128)
    rcl = jax.lax.broadcasted_iota(jnp.int32, (NUM_REL_CLS, SLAB_LANES), 1)
    rcr = jax.lax.broadcasted_iota(jnp.int32, (NUM_REL_CLS, SLAB_LANES), 0)
    pad_r = (rcl == rcr).astype(f32)                   # (8, 128)
    out_ref[...] = jnp.concatenate(
        [dot(node_cls, pad_n), dot(edge_cls, pad_r)], axis=0)             # (24, 128)


# ------------------------------- wrapper -------------------------------------
@jax.jit
def sgfn_forward(pts, descriptor, edge_index, slab):
    # lane-dense point layout: channels on sublanes, points on lanes (lane = p*8 + o),
    # with a constant-one row so the first bias is folded into the MXU.
    pts_cd = jnp.transpose(pts, (1, 2, 0)).reshape(3, N_LANE)
    x0 = jnp.concatenate([pts_cd, jnp.ones((1, N_LANE), jnp.float32)], axis=0)
    ei_t = edge_index.T.astype(jnp.int32)

    vmem = pl.BlockSpec(memory_space=pltpu.MemorySpace.VMEM)
    out = pl.pallas_call(
        _sgfn_kernel,
        out_shape=jax.ShapeDtypeStruct((OUT_ROWS, SLAB_LANES), jnp.float32),
        in_specs=[vmem, vmem, vmem, vmem],     # gridless: single resident VMEM blocks,
        out_specs=vmem,                        # no double-buffering for a 1-step kernel
    )(ei_t, x0, descriptor, slab)

    node_cls = out[0:N_OBJ, 0:NUM_OBJ_CLS]
    edge_cls = out[N_OBJ:N_OBJ + N_EDGE, 0:NUM_REL_CLS]
    return node_cls, edge_cls


def sgfn_reference(pts, descriptor, edge_index, params):
    """Pure-JAX reference mirroring the PyTorch math (for correctness check)."""
    dot = jnp.dot
    relu = lambda a: jnp.maximum(a, 0.0)

    pts_flat = jnp.transpose(pts, (0, 2, 1)).reshape(N_OBJ * N_PTS, 3)
    (w1, b1), (w2, b2), (w3, b3) = params['pt1'], params['pt2'], params['pt3']
    h = relu(dot(pts_flat, w1) + b1)
    h = relu(dot(h, w2) + b2)
    h = dot(h, w3) + b3
    pt_feat = jnp.max(h.reshape(N_OBJ, N_PTS, PT_OUT), axis=1)

    ws, bs = params['sp']
    tmp = jnp.concatenate([descriptor[:, 3:9], jnp.log(descriptor[:, 9:11])], axis=1)
    sp = dot(tmp, ws) + bs
    x = jnp.concatenate([pt_feat, sp], axis=1)

    (wc1, bc1), (wc2, bc2), (wc3, bc3) = params['nc1'], params['nc2'], params['nc3']
    node_cls = dot(relu(dot(relu(dot(x, wc1) + bc1), wc2) + bc2), wc3) + bc3

    d_src = jnp.take(descriptor, edge_index[0], axis=0)
    d_dst = jnp.take(descriptor, edge_index[1], axis=0)
    rel = jnp.concatenate([
        d_src[:, 0:3] - d_dst[:, 0:3],
        d_src[:, 3:6] - d_dst[:, 3:6],
        jnp.log(d_src[:, 6:9]) - jnp.log(d_dst[:, 6:9]),
        jnp.log(d_src[:, 9:10]) - jnp.log(d_dst[:, 9:10]),
        jnp.log(d_src[:, 10:11]) - jnp.log(d_dst[:, 10:11]),
    ], axis=1)
    (we1, be1), (we2, be2), (we3, be3) = params['eg1'], params['eg2'], params['eg3']
    e = dot(relu(dot(relu(dot(rel, we1) + be1), we2) + be2), we3) + be3
    (wr1, br1), (wr2, br2), (wr3, br3) = params['rc1'], params['rc2'], params['rc3']
    logits = dot(relu(dot(relu(dot(e, wr1) + br1), wr2) + br2), wr3) + br3
    edge_cls = jax.nn.log_softmax(logits, axis=1)
    return node_cls, edge_cls


def _lin(key, din, dout):
    kw, kb = jax.random.split(key)
    w = jax.random.normal(kw, (din, dout), jnp.float32) / jnp.sqrt(float(din))
    b = 0.01 * jax.random.normal(kb, (1, dout), jnp.float32)
    return w, b


if __name__ == "__main__":
    key = jax.random.PRNGKey(0)
    ks = jax.random.split(key, 16)

    # ---- deterministic parameters -------------------------------------------
    params = {
        'pt1': _lin(ks[0], 3, PT_H1),
        'pt2': _lin(ks[1], PT_H1, PT_H2),
        'pt3': _lin(ks[2], PT_H2, PT_OUT),
        'sp':  _lin(ks[3], 8, SP_OUT),
        'nc1': _lin(ks[4], NODE_DIM, CLS_H1),
        'nc2': _lin(ks[5], CLS_H1, CLS_H2),
        'nc3': _lin(ks[6], CLS_H2, NUM_OBJ_CLS),
        'eg1': _lin(ks[7], EDGE_REL_IN, EG_H1),
        'eg2': _lin(ks[8], EG_H1, EG_H2),
        'eg3': _lin(ks[9], EG_H2, EDGE_DIM),
        'rc1': _lin(ks[10], EDGE_DIM, CLS_H1),
        'rc2': _lin(ks[11], CLS_H1, CLS_H2),
        'rc3': _lin(ks[12], CLS_H2, NUM_REL_CLS),
    }
    slab = pack_params(params)            # packed once, reused every forward call

    # ---- deterministic inputs ------------------------------------------------
    pts = jax.random.normal(ks[13], (N_OBJ, 3, N_PTS), jnp.float32)   # NCW, like Conv1d input
    centroid = 0.5 * jax.random.normal(ks[14], (N_OBJ, 3), jnp.float32)
    rest = jnp.abs(jax.random.normal(ks[15], (N_OBJ, 6), jnp.float32)) + 0.1
    std, dims = rest[:, 0:3], rest[:, 3:6]
    volume = jnp.prod(dims, axis=1, keepdims=True)
    length = jnp.max(dims, axis=1, keepdims=True)
    descriptor = jnp.concatenate([centroid, std, dims, volume, length], axis=1)  # (N, 11)

    src = jnp.arange(N_OBJ, dtype=jnp.int32)
    edge_index = jnp.stack([
        jnp.concatenate([src, src]),
        jnp.concatenate([(src + 1) % N_OBJ, (src + 3) % N_OBJ]),
    ], axis=0)                                                        # (2, N_EDGE)

    # ---- run fused kernel + check against pure-JAX reference -----------------
    node_cls, edge_cls = sgfn_forward(pts, descriptor, edge_index, slab)
    jax.block_until_ready((node_cls, edge_cls))

    node_ref, edge_ref = sgfn_reference(pts, descriptor, edge_index, params)
    assert node_cls.shape == (N_OBJ, NUM_OBJ_CLS)
    assert edge_cls.shape == (N_EDGE, NUM_REL_CLS)
    # tolerance deliberately loose vs MXU default-precision f32 matmuls
    assert jnp.allclose(node_cls, node_ref, rtol=1e-2, atol=1e-2)
    assert jnp.allclose(edge_cls, edge_ref, rtol=1e-2, atol=1e-2)

    print("KERNEL_OK")
</pallas_src>

<mosaic_0001>
module attributes {stable_mosaic.version = 11 : i64} {
  func.func @_sgfn_kernel(%arg0: memref<16x2xi32, #tpu.memory_space<vmem>>, %arg1: memref<4x512xf32, #tpu.memory_space<vmem>>, %arg2: memref<8x11xf32, #tpu.memory_space<vmem>>, %arg3: memref<184x128xf32, #tpu.memory_space<vmem>>, %arg4: memref<24x128xf32, #tpu.memory_space<vmem>>) attributes {dimension_semantics = [], scalar_prefetch = 0 : i64, scratch_operands = 0 : i64, tpu.core_type = #tpu.core_type<tc>} {
    %c0 = arith.constant 0 : index
    %c0_0 = arith.constant 0 : index
    %0 = vector.load %arg1[%c0, %c0_0] : memref<4x512xf32, #tpu.memory_space<vmem>>, vector<4x512xf32>
    %c0_1 = arith.constant 0 : index
    %c104 = arith.constant 104 : index
    %1 = vector.load %arg3[%c0_1, %c104] : memref<184x128xf32, #tpu.memory_space<vmem>>, vector<33x4xf32>
    %cst = arith.constant dense<0.000000e+00> : vector<33x512xf32>
    %2 = tpu.matmul %1, %0, %cst {dimension_numbers = #tpu.dot_dimension_numbers<[1], [0], [0], [1], [0, 0, 1, 1], [], []>} : vector<33x4xf32>, vector<4x512xf32>, vector<33x512xf32> -> vector<33x512xf32>
    %cst_2 = arith.constant 0.000000e+00 : f32
    %3 = vector.broadcast %cst_2 : f32 to vector<33x512xf32>
    %4 = arith.maximumf %2, %3 : vector<33x512xf32>
    %c0_3 = arith.constant 0 : index
    %c0_4 = arith.constant 0 : index
    %5 = vector.load %arg3[%c0_3, %c0_4] : memref<184x128xf32, #tpu.memory_space<vmem>>, vector<65x33xf32>
    %cst_5 = arith.constant dense<0.000000e+00> : vector<65x512xf32>
    %6 = tpu.matmul %5, %4, %cst_5 {dimension_numbers = #tpu.dot_dimension_numbers<[1], [0], [0], [1], [0, 0, 1, 1], [], []>} : vector<65x33xf32>, vector<33x512xf32>, vector<65x512xf32> -> vector<65x512xf32>
    %cst_6 = arith.constant 0.000000e+00 : f32
    %7 = vector.broadcast %cst_6 : f32 to vector<65x512xf32>
    %8 = arith.maximumf %6, %7 : vector<65x512xf32>
    %c160 = arith.constant 160 : index
    %c0_7 = arith.constant 0 : index
    %9 = vector.load %arg3[%c160, %c0_7] : memref<184x128xf32, #tpu.memory_space<vmem>>, vector<24x65xf32>
    %cst_8 = arith.constant dense<0.000000e+00> : vector<24x512xf32>
    %10 = tpu.matmul %9, %8, %cst_8 {dimension_numbers = #tpu.dot_dimension_numbers<[1], [0], [0], [1], [0, 0, 1, 1], [], []>} : vector<24x65xf32>, vector<65x512xf32>, vector<24x512xf32> -> vector<24x512xf32>
    %c8_i32 = arith.constant 8 : i32
    %11 = tpu.dynamic_rotate %10 by %c8_i32 dim 1 : vector<24x512xf32>, i32 -> vector<24x512xf32>
    %12 = arith.maximumf %10, %11 : vector<24x512xf32>
    %c16_i32 = arith.constant 16 : i32
    %13 = tpu.dynamic_rotate %12 by %c16_i32 dim 1 : vector<24x512xf32>, i32 -> vector<24x512xf32>
    %14 = arith.maximumf %12, %13 : vector<24x512xf32>
    %c32_i32 = arith.constant 32 : i32
    %15 = tpu.dynamic_rotate %14 by %c32_i32 dim 1 : vector<24x512xf32>, i32 -> vector<24x512xf32>
    %16 = arith.maximumf %14, %15 : vector<24x512xf32>
    %c64_i32 = arith.constant 64 : i32
    %17 = tpu.dynamic_rotate %16 by %c64_i32 dim 1 : vector<24x512xf32>, i32 -> vector<24x512xf32>
    %18 = arith.maximumf %16, %17 : vector<24x512xf32>
    %c128_i32 = arith.constant 128 : i32
    %19 = tpu.dynamic_rotate %18 by %c128_i32 dim 1 : vector<24x512xf32>, i32 -> vector<24x512xf32>
    %20 = arith.maximumf %18, %19 : vector<24x512xf32>
    %c256_i32 = arith.constant 256 : i32
    %21 = tpu.dynamic_rotate %20 by %c256_i32 dim 1 : vector<24x512xf32>, i32 -> vector<24x512xf32>
    %22 = arith.maximumf %20, %21 : vector<24x512xf32>
    %23 = tpu.iota {dimensions = array<i32: 1>} : vector<8x512xi32>
    %24 = tpu.iota {dimensions = array<i32: 0>} : vector<8x512xi32>
    %25 = arith.cmpi eq, %23, %24 : vector<8x512xi32>
    %26 = arith.extui %25 : vector<8x512xi1> to vector<8x512xi32>
    %27 = arith.sitofp %26 : vector<8x512xi32> to vector<8x512xf32>
    %cst_9 = arith.constant dense<0.000000e+00> : vector<8x24xf32>
    %28 = tpu.matmul %27, %22, %cst_9 {dimension_numbers = #tpu.dot_dimension_numbers<[1], [1], [0], [0], [0, 0, 1, 0], [], []>} : vector<8x512xf32>, vector<24x512xf32>, vector<8x24xf32> -> vector<8x24xf32>
    %c0_10 = arith.constant 0 : index
    %c0_11 = arith.constant 0 : index
    %29 = vector.load %arg2[%c0_10, %c0_11] : memref<8x11xf32, #tpu.memory_space<vmem>>, vector<8x11xf32>
    %30 = tpu.iota {dimensions = array<i32: 1>} : vector<8x11xi32>
    %c6_i32 = arith.constant 6 : i32
    %31 = vector.broadcast %c6_i32 : i32 to vector<8x11xi32>
    %32 = arith.cmpi sge, %30, %31 : vector<8x11xi32>
    %cst_12 = arith.constant 1.000000e+00 : f32
    %33 = vector.broadcast %cst_12 : f32 to vector<8x11xf32>
    %34 = arith.select %32, %29, %33 : vector<8x11xi1>, vector<8x11xf32>
    %35 = math.log %34 : vector<8x11xf32>
    %c9_i32 = arith.constant 9 : i32
    %36 = vector.broadcast %c9_i32 : i32 to vector<8x11xi32>
    %37 = arith.cmpi sge, %30, %36 : vector<8x11xi32>
    %38 = arith.select %37, %35, %29 : vector<8x11xi1>, vector<8x11xf32>
    %c0_13 = arith.constant 0 : index
    %c116 = arith.constant 116 : index
    %39 = vector.load %arg3[%c0_13, %c116] : memref<184x128xf32, #tpu.memory_space<vmem>>, vector<12x8xf32>
    %40 = vector.extract_strided_slice %39 {offsets = [0, 0], sizes = [11, 8], strides = [1, 1]} : vector<12x8xf32> to vector<11x8xf32>
    %41 = vector.extract_strided_slice %39 {offsets = [11, 0], sizes = [1, 8], strides = [1, 1]} : vector<12x8xf32> to vector<1x8xf32>
    %cst_14 = arith.constant dense<0.000000e+00> : vector<8x8xf32>
    %42 = tpu.matmul %38, %40, %cst_14 {dimension_numbers = #tpu.dot_dimension_numbers<[1], [0], [0], [1], [0, 0, 1, 1], [], []>} : vector<8x11xf32>, vector<11x8xf32>, vector<8x8xf32> -> vector<8x8xf32>
    %43 = vector.broadcast %41 : vector<1x8xf32> to vector<8x8xf32>
    %44 = arith.addf %42, %43 : vector<8x8xf32>
    %c80 = arith.constant 80 : index
    %c0_15 = arith.constant 0 : index
    %45 = vector.load %arg3[%c80, %c0_15] : memref<184x128xf32, #tpu.memory_space<vmem>>, vector<33x64xf32>
    %46 = vector.extract_strided_slice %45 {offsets = [0, 0], sizes = [24, 64], strides = [1, 1]} : vector<33x64xf32> to vector<24x64xf32>
    %cst_16 = arith.constant dense<0.000000e+00> : vector<8x64xf32>
    %47 = tpu.matmul %28, %46, %cst_16 {dimension_numbers = #tpu.dot_dimension_numbers<[1], [0], [0], [1], [0, 0, 1, 1], [], []>} : vector<8x24xf32>, vector<24x64xf32>, vector<8x64xf32> -> vector<8x64xf32>
    %48 = vector.extract_strided_slice %45 {offsets = [24, 0], sizes = [8, 64], strides = [1, 1]} : vector<33x64xf32> to vector<8x64xf32>
    %cst_17 = arith.constant dense<0.000000e+00> : vector<8x64xf32>
    %49 = tpu.matmul %44, %48, %cst_17 {dimension_numbers = #tpu.dot_dimension_numbers<[1], [0], [0], [1], [0, 0, 1, 1], [], []>} : vector<8x8xf32>, vector<8x64xf32>, vector<8x64xf32> -> vector<8x64xf32>
    %50 = arith.addf %47, %49 : vector<8x64xf32>
    %51 = vector.extract_strided_slice %45 {offsets = [32, 0], sizes = [1, 64], strides = [1, 1]} : vector<33x64xf32> to vector<1x64xf32>
    %52 = vector.broadcast %51 : vector<1x64xf32> to vector<8x64xf32>
    %53 = arith.addf %50, %52 : vector<8x64xf32>
    %cst_18 = arith.constant 0.000000e+00 : f32
    %54 = vector.broadcast %cst_18 : f32 to vector<8x64xf32>
    %55 = arith.maximumf %53, %54 : vector<8x64xf32>
    %c0_19 = arith.constant 0 : index
    %c40 = arith.constant 40 : index
    %56 = vector.load %arg3[%c0_19, %c40] : memref<184x128xf32, #tpu.memory_space<vmem>>, vector<65x32xf32>
    %57 = vector.extract_strided_slice %56 {offsets = [0, 0], sizes = [64, 32], strides = [1, 1]} : vector<65x32xf32> to vector<64x32xf32>
    %58 = vector.extract_strided_slice %56 {offsets = [64, 0], sizes = [1, 32], strides = [1, 1]} : vector<65x32xf32> to vector<1x32xf32>
    %cst_20 = arith.constant dense<0.000000e+00> : vector<8x32xf32>
    %59 = tpu.matmul %55, %57, %cst_20 {dimension_numbers = #tpu.dot_dimension_numbers<[1], [0], [0], [1], [0, 0, 1, 1], [], []>} : vector<8x64xf32>, vector<64x32xf32>, vector<8x32xf32> -> vector<8x32xf32>
    %60 = vector.broadcast %58 : vector<1x32xf32> to vector<8x32xf32>
    %61 = arith.addf %59, %60 : vector<8x32xf32>
    %cst_21 = arith.constant 0.000000e+00 : f32
    %62 = vector.broadcast %cst_21 : f32 to vector<8x32xf32>
    %63 = arith.maximumf %61, %62 : vector<8x32xf32>
    %c40_22 = arith.constant 40 : index
    %c104_23 = arith.constant 104 : index
    %64 = vector.load %arg3[%c40_22, %c104_23] : memref<184x128xf32, #tpu.memory_space<vmem>>, vector<33x20xf32>
    %65 = vector.extract_strided_slice %64 {offsets = [0, 0], sizes = [32, 20], strides = [1, 1]} : vector<33x20xf32> to vector<32x20xf32>
    %66 = vector.extract_strided_slice %64 {offsets = [32, 0], sizes = [1, 20], strides = [1, 1]} : vector<33x20xf32> to vector<1x20xf32>
    %cst_24 = arith.constant dense<0.000000e+00> : vector<8x20xf32>
    %67 = tpu.matmul %63, %65, %cst_24 {dimension_numbers = #tpu.dot_dimension_numbers<[1], [0], [0], [1], [0, 0, 1, 1], [], []>} : vector<8x32xf32>, vector<32x20xf32>, vector<8x20xf32> -> vector<8x20xf32>
    %68 = vector.broadcast %66 : vector<1x20xf32> to vector<8x20xf32>
    %69 = arith.addf %67, %68 : vector<8x20xf32>
    %c6_i32_25 = arith.constant 6 : i32
    %70 = vector.broadcast %c6_i32_25 : i32 to vector<8x11xi32>
    %71 = arith.cmpi sge, %30, %70 : vector<8x11xi32>
    %72 = arith.select %71, %35, %29 : vector<8x11xi1>, vector<8x11xf32>
    %c0_26 = arith.constant 0 : index
    %c0_27 = arith.constant 0 : index
    %73 = vector.load %arg0[%c0_26, %c0_27] : memref<16x2xi32, #tpu.memory_space<vmem>>, vector<16x2xi32>
    %74 = tpu.iota {dimensions = array<i32: 1>} : vector<16x8xi32>
    %75 = vector.extract_strided_slice %73 {offsets = [0, 0], sizes = [16, 1], strides = [1, 1]} : vector<16x2xi32> to vector<16x1xi32>
    %76 = vector.broadcast %75 : vector<16x1xi32> to vector<16x8xi32>
    %77 = arith.cmpi eq, %76, %74 : vector<16x8xi32>
    %78 = arith.extui %77 : vector<16x8xi1> to vector<16x8xi32>
    %79 = arith.sitofp %78 : vector<16x8xi32> to vector<16x8xf32>
    %80 = vector.extract_strided_slice %73 {offsets = [0, 1], sizes = [16, 1], strides = [1, 1]} : vector<16x2xi32> to vector<16x1xi32>
    %81 = vector.broadcast %80 : vector<16x1xi32> to vector<16x8xi32>
    %82 = arith.cmpi eq, %81, %74 : vector<16x8xi32>
    %83 = arith.extui %82 : vector<16x8xi1> to vector<16x8xi32>
    %84 = arith.sitofp %83 : vector<16x8xi32> to vector<16x8xf32>
    %85 = arith.subf %79, %84 : vector<16x8xf32>
    %cst_28 = arith.constant dense<0.000000e+00> : vector<16x11xf32>
    %86 = tpu.matmul %85, %72, %cst_28 {dimension_numbers = #tpu.dot_dimension_numbers<[1], [0], [0], [1], [0, 0, 1, 1], [], []>} : vector<16x8xf32>, vector<8x11xf32>, vector<16x11xf32> -> vector<16x11xf32>
    %c120 = arith.constant 120 : index
    %c64 = arith.constant 64 : index
    %87 = vector.load %arg3[%c120, %c64] : memref<184x128xf32, #tpu.memory_space<vmem>>, vector<12x32xf32>
    %88 = vector.extract_strided_slice %87 {offsets = [0, 0], sizes = [11, 32], strides = [1, 1]} : vector<12x32xf32> to vector<11x32xf32>
    %89 = vector.extract_strided_slice %87 {offsets = [11, 0], sizes = [1, 32], strides = [1, 1]} : vector<12x32xf32> to vector<1x32xf32>
    %cst_29 = arith.constant dense<0.000000e+00> : vector<16x32xf32>
    %90 = tpu.matmul %86, %88, %cst_29 {dimension_numbers = #tpu.dot_dimension_numbers<[1], [0], [0], [1], [0, 0, 1, 1], [], []>} : vector<16x11xf32>, vector<11x32xf32>, vector<16x32xf32> -> vector<16x32xf32>
    %91 = vector.broadcast %89 : vector<1x32xf32> to vector<16x32xf32>
    %92 = arith.addf %90, %91 : vector<16x32xf32>
    %cst_30 = arith.constant 0.000000e+00 : f32
    %93 = vector.broadcast %cst_30 : f32 to vector<16x32xf32>
    %94 = arith.maximumf %92, %93 : vector<16x32xf32>
    %c80_31 = arith.constant 80 : index
    %c64_32 = arith.constant 64 : index
    %95 = vector.load %arg3[%c80_31, %c64_32] : memref<184x128xf32, #tpu.memory_space<vmem>>, vector<33x32xf32>
    %96 = vector.extract_strided_slice %95 {offsets = [0, 0], sizes = [32, 32], strides = [1, 1]} : vector<33x32xf32> to vector<32x32xf32>
    %97 = vector.extract_strided_slice %95 {offsets = [32, 0], sizes = [1, 32], strides = [1, 1]} : vector<33x32xf32> to vector<1x32xf32>
    %cst_33 = arith.constant dense<0.000000e+00> : vector<16x32xf32>
    %98 = tpu.matmul %94, %96, %cst_33 {dimension_numbers = #tpu.dot_dimension_numbers<[1], [0], [0], [1], [0, 0, 1, 1], [], []>} : vector<16x32xf32>, vector<32x32xf32>, vector<16x32xf32> -> vector<16x32xf32>
    %99 = vector.broadcast %97 : vector<1x32xf32> to vector<16x32xf32>
    %100 = arith.addf %98, %99 : vector<16x32xf32>
    %cst_34 = arith.constant 0.000000e+00 : f32
    %101 = vector.broadcast %cst_34 : f32 to vector<16x32xf32>
    %102 = arith.maximumf %100, %101 : vector<16x32xf32>
    %c80_35 = arith.constant 80 : index
    %c96 = arith.constant 96 : index
    %103 = vector.load %arg3[%c80_35, %c96] : memref<184x128xf32, #tpu.memory_space<vmem>>, vector<33x32xf32>
    %104 = vector.extract_strided_slice %103 {offsets = [0, 0], sizes = [32, 32], strides = [1, 1]} : vector<33x32xf32> to vector<32x32xf32>
    %105 = vector.extract_strided_slice %103 {offsets = [32, 0], sizes = [1, 32], strides = [1, 1]} : vector<33x32xf32> to vector<1x32xf32>
    %cst_36 = arith.constant dense<0.000000e+00> : vector<16x32xf32>
    %106 = tpu.matmul %102, %104, %cst_36 {dimension_numbers = #tpu.dot_dimension_numbers<[1], [0], [0], [1], [0, 0, 1, 1], [], []>} : vector<16x32xf32>, vector<32x32xf32>, vector<16x32xf32> -> vector<16x32xf32>
    %107 = vector.broadcast %105 : vector<1x32xf32> to vector<16x32xf32>
    %108 = arith.addf %106, %107 : vector<16x32xf32>
    %c120_37 = arith.constant 120 : index
    %c0_38 = arith.constant 0 : index
    %109 = vector.load %arg3[%c120_37, %c0_38] : memref<184x128xf32, #tpu.memory_space<vmem>>, vector<33x64xf32>
    %110 = vector.extract_strided_slice %109 {offsets = [0, 0], sizes = [32, 64], strides = [1, 1]} : vector<33x64xf32> to vector<32x64xf32>
    %111 = vector.extract_strided_slice %109 {offsets = [32, 0], sizes = [1, 64], strides = [1, 1]} : vector<33x64xf32> to vector<1x64xf32>
    %cst_39 = arith.constant dense<0.000000e+00> : vector<16x64xf32>
    %112 = tpu.matmul %108, %110, %cst_39 {dimension_numbers = #tpu.dot_dimension_numbers<[1], [0], [0], [1], [0, 0, 1, 1], [], []>} : vector<16x32xf32>, vector<32x64xf32>, vector<16x64xf32> -> vector<16x64xf32>
    %113 = vector.broadcast %111 : vector<1x64xf32> to vector<16x64xf32>
    %114 = arith.addf %112, %113 : vector<16x64xf32>
    %cst_40 = arith.constant 0.000000e+00 : f32
    %115 = vector.broadcast %cst_40 : f32 to vector<16x64xf32>
    %116 = arith.maximumf %114, %115 : vector<16x64xf32>
    %c0_41 = arith.constant 0 : index
    %c72 = arith.constant 72 : index
    %117 = vector.load %arg3[%c0_41, %c72] : memref<184x128xf32, #tpu.memory_space<vmem>>, vector<65x32xf32>
    %118 = vector.extract_strided_slice %117 {offsets = [0, 0], sizes = [64, 32], strides = [1, 1]} : vector<65x32xf32> to vector<64x32xf32>
    %119 = vector.extract_strided_slice %117 {offsets = [64, 0], sizes = [1, 32], strides = [1, 1]} : vector<65x32xf32> to vector<1x32xf32>
    %cst_42 = arith.constant dense<0.000000e+00> : vector<16x32xf32>
    %120 = tpu.matmul %116, %118, %cst_42 {dimension_numbers = #tpu.dot_dimension_numbers<[1], [0], [0], [1], [0, 0, 1, 1], [], []>} : vector<16x64xf32>, vector<64x32xf32>, vector<16x32xf32> -> vector<16x32xf32>
    %121 = vector.broadcast %119 : vector<1x32xf32> to vector<16x32xf32>
    %122 = arith.addf %120, %121 : vector<16x32xf32>
    %cst_43 = arith.constant 0.000000e+00 : f32
    %123 = vector.broadcast %cst_43 : f32 to vector<16x32xf32>
    %124 = arith.maximumf %122, %123 : vector<16x32xf32>
    %c0_44 = arith.constant 0 : index
    %c108 = arith.constant 108 : index
    %125 = vector.load %arg3[%c0_44, %c108] : memref<184x128xf32, #tpu.memory_space<vmem>>, vector<33x8xf32>
    %126 = vector.extract_strided_slice %125 {offsets = [0, 0], sizes = [32, 8], strides = [1, 1]} : vector<33x8xf32> to vector<32x8xf32>
    %127 = vector.extract_strided_slice %125 {offsets = [32, 0], sizes = [1, 8], strides = [1, 1]} : vector<33x8xf32> to vector<1x8xf32>
    %cst_45 = arith.constant dense<0.000000e+00> : vector<16x8xf32>
    %128 = tpu.matmul %124, %126, %cst_45 {dimension_numbers = #tpu.dot_dimension_numbers<[1], [0], [0], [1], [0, 0, 1, 1], [], []>} : vector<16x32xf32>, vector<32x8xf32>, vector<16x8xf32> -> vector<16x8xf32>
    %129 = vector.broadcast %127 : vector<1x8xf32> to vector<16x8xf32>
    %130 = arith.addf %128, %129 : vector<16x8xf32>
    %cst_46 = arith.constant dense<0xFF800000> : vector<16xf32>
    %131 = vector.multi_reduction <maximumf>, %130, %cst_46 [1] : vector<16x8xf32> to vector<16xf32>
    %132 = vector.shape_cast %131 : vector<16xf32> to vector<16x1xf32>
    %133 = vector.broadcast %132 : vector<16x1xf32> to vector<16x8xf32>
    %134 = arith.subf %130, %133 : vector<16x8xf32>
    %135 = math.exp %134 : vector<16x8xf32>
    %cst_47 = arith.constant dense<0.000000e+00> : vector<16xf32>
    %136 = vector.multi_reduction <add>, %135, %cst_47 [1] : vector<16x8xf32> to vector<16xf32>
    %137 = vector.shape_cast %136 : vector<16xf32> to vector<16x1xf32>
    %138 = math.log %137 : vector<16x1xf32>
    %139 = arith.addf %132, %138 : vector<16x1xf32>
    %140 = vector.broadcast %139 : vector<16x1xf32> to vector<16x8xf32>
    %141 = arith.subf %130, %140 : vector<16x8xf32>
    %142 = tpu.iota {dimensions = array<i32: 1>} : vector<20x128xi32>
    %143 = tpu.iota {dimensions = array<i32: 0>} : vector<20x128xi32>
    %144 = arith.cmpi eq, %142, %143 : vector<20x128xi32>
    %145 = arith.extui %144 : vector<20x128xi1> to vector<20x128xi32>
    %146 = arith.sitofp %145 : vector<20x128xi32> to vector<20x128xf32>
    %147 = tpu.iota {dimensions = array<i32: 1>} : vector<8x128xi32>
    %148 = tpu.iota {dimensions = array<i32: 0>} : vector<8x128xi32>
    %149 = arith.cmpi eq, %147, %148 : vector<8x128xi32>
    %150 = arith.extui %149 : vector<8x128xi1> to vector<8x128xi32>
    %151 = arith.sitofp %150 : vector<8x128xi32> to vector<8x128xf32>
    %cst_48 = arith.constant dense<0.000000e+00> : vector<8x128xf32>
    %152 = tpu.matmul %69, %146, %cst_48 {dimension_numbers = #tpu.dot_dimension_numbers<[1], [0], [0], [1], [0, 0, 1, 1], [], []>} : vector<8x20xf32>, vector<20x128xf32>, vector<8x128xf32> -> vector<8x128xf32>
    %cst_49 = arith.constant dense<0.000000e+00> : vector<16x128xf32>
    %153 = tpu.matmul %141, %151, %cst_49 {dimension_numbers = #tpu.dot_dimension_numbers<[1], [0], [0], [1], [0, 0, 1, 1], [], []>} : vector<16x8xf32>, vector<8x128xf32>, vector<16x128xf32> -> vector<16x128xf32>
    %154 = tpu.concatenate %152, %153 in 0 : vector<8x128xf32>, vector<16x128xf32> -> vector<24x128xf32>
    %c0_50 = arith.constant 0 : index
    %c0_51 = arith.constant 0 : index
    %155 = vector.load %arg4[%c0_50, %c0_51] : memref<24x128xf32, #tpu.memory_space<vmem>>, vector<24x128xf32>
    tpu.vector_store %arg4[%c0_50, %c0_51], %154 {strides = array<i32>} : memref<24x128xf32, #tpu.memory_space<vmem>>, vector<24x128xf32>,
    return
  }
}

</mosaic_0001>

<llo_original>
// kernel: sgfn_forward.1
$region0: #{sgfn_forward.1}
  #allocation0 [shape = 'u32[]', space=smem, size = 0x4, offset = 0x4, fixed_abs, tag = 'smem constant byte address 0x4 - core index']
  #allocation1 [shape = 'u32[72,128]{1,0:T(1,128)}', space=vmem, size = 0x9000, scoped, tag = 'internal scratch']
  %s0 = inlined_call_operand.vmem [shape: s32[16,2], index: 0, kind: input, shape index: {}]
  %s1 = inlined_call_operand.vmem [shape: f32[4,512], index: 1, kind: input, shape index: {}]
  %s2 = inlined_call_operand.vmem [shape: f32[8,11], index: 2, kind: input, shape index: {}]
  %s3 = inlined_call_operand.vmem [shape: f32[184,128], index: 3, kind: input, shape index: {}]
  %s4 = inlined_call_operand.vmem [shape: f32[24,128], index: 4, kind: output, shape index: {}]
  %s5 = sld [smem:[#allocation0]]
  $region26: #{sgfn_forward.1} parent=0
    _
  %s7 = ssub.s32 1, %s5
  %s8 = scalar_select 0, %s7, %s5
  // Predicated region
  $region2: #{sgfn_forward.1} parent=0 // pred_check
    _
  $region3: #{sgfn_forward.1} parent=0 // pred_check_branch
    %10 = sbr.rel (0) target = $region5
  $region4: #{sgfn_forward.1} parent=0 // pred_region
    _
  $region5: #{sgfn_forward.1} parent=0 // pred_fallthru
    _
  // Predicated region
  $region6: #{sgfn_forward.1} parent=0 // pred_check
    _
  $region7: #{sgfn_forward.1} parent=0 // pred_check_branch
    %12 = sbr.rel (0) target = $region9
  $region8: #{sgfn_forward.1} parent=0 // pred_region
    _
  $region9: #{sgfn_forward.1} parent=0 // pred_fallthru
    _
  // Predicated region
  $region10: #{sgfn_forward.1} parent=0 // pred_check
    _
  $region11: #{sgfn_forward.1} parent=0 // pred_check_branch
    %14 = sbr.rel (0) target = $region13
  $region12: #{sgfn_forward.1} parent=0 // pred_region
    _
  $region13: #{sgfn_forward.1} parent=0 // pred_fallthru
    _
  // Predicated region
  $region14: #{sgfn_forward.1} parent=0 // pred_check
    _
  $region15: #{sgfn_forward.1} parent=0 // pred_check_branch
    %16 = sbr.rel (0) target = $region17
  $region16: #{sgfn_forward.1} parent=0 // pred_region
    _
  $region17: #{sgfn_forward.1} parent=0 // pred_fallthru
    _
  %v17 = vld [vmem:[%s1] sm:$0xff]
  %v18 = vld [vmem:[%s1 + $0x8] sm:$0xff]
  %v19 = vld [vmem:[%s3] sm:$0xff]
  %v20 = vld [vmem:[%s3 + $0x8] sm:$0xff]
  %v21 = vld [vmem:[%s3 + $0x10] sm:$0xff]
  %v22 = vld [vmem:[%s3 + $0x18] sm:$0xff]
  %v23 = vld [vmem:[%s3 + $0x20] sm:$0x1]
  %29 = vrot.lane.b32.xlu0 %v19, 24
  %v30 = vpop.permute.xlu0 %29
  %31 = vrot.lane.b32.xlu0 %v20, 24
  %v32 = vpop.permute.xlu0 %31
  %33 = vrot.lane.b32.xlu0 %v21, 24
  %v34 = vpop.permute.xlu0 %33
  %35 = vrot.lane.b32.xlu0 %v22, 24
  %v36 = vpop.permute.xlu0 %35
  %37 = vrot.lane.b32.xlu0 %v23, 24
  %v38 = vpop.permute.xlu0 %37
  %41 = vst [vmem:[#allocation1] ss:$2 sm:$0xff] %v17
  %s42 = scalar_lea.vmem [#allocation1], 16
  %43 = vst [vmem:[%s42] ss:$2 sm:$0xff] %v18
  %v44 = vld.sshfl [vmem:[#allocation1] sm:$0xff pattern:$0x75316420]
  %v45 = vld.sshfl [vmem:[#allocation1 + $0x8] sm:$0xff pattern:$0x75316420]
  %v46 = vld.sshfl [vmem:[#allocation1 + $0x10] sm:$0xff pattern:$0x75316420]
  %v47 = vld.sshfl [vmem:[#allocation1 + $0x18] sm:$0xff pattern:$0x75316420]
  %vm48 = vcmask 31744
  %v49 = vsel %vm48, %v30, 0
  %v51 = vsel %vm48, %v32, 0
  %v53 = vsel %vm48, %v34, 0
  %v55 = vsel %vm48, %v36, 0
  %v57 = vsel %vm48, %v38, 0
  %vm59 = vcmask 1043456
  %v60 = vsel %vm59, %v44, 0
  %v62 = vsel %vm59, %v45, 0
  %v64 = vsel %vm59, %v46, 0
  %v66 = vsel %vm59, %v47, 0
  %68 = vmatpush.msra.mxu0 0.0
  %69 = vmatpush.msra.mxu0 0.0
  %70 = vmatpush.msra.mxu0 0.0
  %71 = vmatpush.msra.mxu0 0.0
  %72 = vmatpush.msra.mxu0 0.0
  %73 = vmatpush.msra.mxu0 0.0
  %74 = vmatpush.msra.mxu0 0.0
  %75 = vmatpush.msra.mxu0 0.0
  %76 = vmatpush.msra.mxu0 0.0
  %77 = vmatpush.msra.mxu0 0.0
  %78 = vmatpush.msra.mxu0 0.0
  %79 = vmatpush.msra.mxu0 0.0
  %80 = vmatpush.msra.mxu0 0.0
  %81 = vmatpush.msra.mxu0 0.0
  %82 = vmatpush.msra.mxu0 0.0
  %83 = vmatpush.msra.mxu0 %v60
  %84 = vmatmul.f32.gmra.mxu0 %v49
  %v85 = vpop.f32.mrf.mxu0
  %v86 = vadd.f32 0.0, %v85
  %87 = vmatmul.f32.gmra.mxu0 %v51
  %v88 = vpop.f32.mrf.mxu0
  %v89 = vadd.f32 0.0, %v88
  %90 = vmatmul.f32.gmra.mxu0 %v53
  %v91 = vpop.f32.mrf.mxu0
  %v92 = vadd.f32 0.0, %v91
  %93 = vmatmul.f32.gmra.mxu0 %v55
  %v94 = vpop.f32.mrf.mxu0
  %v95 = vadd.f32 0.0, %v94
  %96 = vmatmul.f32.gmra.mxu0 %v57
  %v97 = vpop.f32.mrf.mxu0
  %v98 = vadd.f32 0.0, %v97
  %99 = vdwg.mxu0
  %100 = vmatpush.msra.mxu0 0.0
  %101 = vmatpush.msra.mxu0 0.0
  %102 = vmatpush.msra.mxu0 0.0
  %103 = vmatpush.msra.mxu0 0.0
  %104 = vmatpush.msra.mxu0 0.0
  %105 = vmatpush.msra.mxu0 0.0
  %106 = vmatpush.msra.mxu0 0.0
  %107 = vmatpush.msra.mxu0 0.0
  %108 = vmatpush.msra.mxu0 0.0
  %109 = vmatpush.msra.mxu0 0.0
  %110 = vmatpush.msra.mxu0 0.0
  %111 = vmatpush.msra.mxu0 0.0
  %112 = vmatpush.msra.mxu0 0.0
  %113 = vmatpush.msra.mxu0 0.0
  %114 = vmatpush.msra.mxu0 0.0
  %115 = vmatpush.msra.mxu0 %v62
  %116 = vmatmul.f32.gmra.mxu0 %v49
  %v117 = vpop.f32.mrf.mxu0
  %v118 = vadd.f32 0.0, %v117
  %119 = vmatmul.f32.gmra.mxu0 %v51
  %v120 = vpop.f32.mrf.mxu0
  %v121 = vadd.f32 0.0, %v120
  %122 = vmatmul.f32.gmra.mxu0 %v53
  %v123 = vpop.f32.mrf.mxu0
  %v124 = vadd.f32 0.0, %v123
  %125 = vmatmul.f32.gmra.mxu0 %v55
  %v126 = vpop.f32.mrf.mxu0
  %v127 = vadd.f32 0.0, %v126
  %128 = vmatmul.f32.gmra.mxu0 %v57
  %v129 = vpop.f32.mrf.mxu0
  %v130 = vadd.f32 0.0, %v129
  %131 = vdwg.mxu0
  %132 = vmatpush.msra.mxu0 0.0
  %133 = vmatpush.msra.mxu0 0.0
  %134 = vmatpush.msra.mxu0 0.0
  %135 = vmatpush.msra.mxu0 0.0
  %136 = vmatpush.msra.mxu0 0.0
  %137 = vmatpush.msra.mxu0 0.0
  %138 = vmatpush.msra.mxu0 0.0
  %139 = vmatpush.msra.mxu0 0.0
  %140 = vmatpush.msra.mxu0 0.0
  %141 = vmatpush.msra.mxu0 0.0
  %142 = vmatpush.msra.mxu0 0.0
  %143 = vmatpush.msra.mxu0 0.0
  %144 = vmatpush.msra.mxu0 0.0
  %145 = vmatpush.msra.mxu0 0.0
  %146 = vmatpush.msra.mxu0 0.0
  %147 = vmatpush.msra.mxu0 %v64
  %148 = vmatmul.f32.gmra.mxu0 %v49
  %v149 = vpop.f32.mrf.mxu0
  %v150 = vadd.f32 0.0, %v149
  %151 = vmatmul.f32.gmra.mxu0 %v51
  %v152 = vpop.f32.mrf.mxu0
  %v153 = vadd.f32 0.0, %v152
  %154 = vmatmul.f32.gmra.mxu0 %v53
  %v155 = vpop.f32.mrf.mxu0
  %v156 = vadd.f32 0.0, %v155
  %157 = vmatmul.f32.gmra.mxu0 %v55
  %v158 = vpop.f32.mrf.mxu0
  %v159 = vadd.f32 0.0, %v158
  %160 = vmatmul.f32.gmra.mxu0 %v57
  %v161 = vpop.f32.mrf.mxu0
  %v162 = vadd.f32 0.0, %v161
  %163 = vdwg.mxu0
  %164 = vmatpush.msra.mxu0 0.0
  %165 = vmatpush.msra.mxu0 0.0
  %166 = vmatpush.msra.mxu0 0.0
  %167 = vmatpush.msra.mxu0 0.0
  %168 = vmatpush.msra.mxu0 0.0
  %169 = vmatpush.msra.mxu0 0.0
  %170 = vmatpush.msra.mxu0 0.0
  %171 = vmatpush.msra.mxu0 0.0
  %172 = vmatpush.msra.mxu0 0.0
  %173 = vmatpush.msra.mxu0 0.0
  %174 = vmatpush.msra.mxu0 0.0
  %175 = vmatpush.msra.mxu0 0.0
  %176 = vmatpush.msra.mxu0 0.0
  %177 = vmatpush.msra.mxu0 0.0
  %178 = vmatpush.msra.mxu0 0.0
  %179 = vmatpush.msra.mxu0 %v66
  %180 = vmatmul.f32.gmra.mxu0 %v49
  %v181 = vpop.f32.mrf.mxu0
  %v182 = vadd.f32 0.0, %v181
  %183 = vmatmul.f32.gmra.mxu0 %v51
  %v184 = vpop.f32.mrf.mxu0
  %v185 = vadd.f32 0.0, %v184
  %186 = vmatmul.f32.gmra.mxu0 %v53
  %v187 = vpop.f32.mrf.mxu0
  %v188 = vadd.f32 0.0, %v187
  %189 = vmatmul.f32.gmra.mxu0 %v55
  %v190 = vpop.f32.mrf.mxu0
  %v191 = vadd.f32 0.0, %v190
  %192 = vmatmul.f32.gmra.mxu0 %v57
  %v193 = vpop.f32.mrf.mxu0
  %v194 = vadd.f32 0.0, %v193
  %195 = vdwg.mxu0
  %v196 = vmax.f32 %v86, 0.0
  %v197 = vmax.f32 %v118, 0.0
  %v198 = vmax.f32 %v150, 0.0
  %v199 = vmax.f32 %v182, 0.0
  %v200 = vmax.f32 %v89, 0.0
  %v201 = vmax.f32 %v121, 0.0
  %v202 = vmax.f32 %v153, 0.0
  %v203 = vmax.f32 %v185, 0.0
  %v204 = vmax.f32 %v92, 0.0
  %v205 = vmax.f32 %v124, 0.0
  %v206 = vmax.f32 %v156, 0.0
  %v207 = vmax.f32 %v188, 0.0
  %v208 = vmax.f32 %v95, 0.0
  %v209 = vmax.f32 %v127, 0.0
  %v210 = vmax.f32 %v159, 0.0
  %v211 = vmax.f32 %v191, 0.0
  %v212 = vmax.f32 %v98, 0.0
  %v213 = vmax.f32 %v130, 0.0
  %v214 = vmax.f32 %v162, 0.0
  %v215 = vmax.f32 %v194, 0.0
  %v216 = vld [vmem:[%s3] sm:$0xff]
  %v217 = vld [vmem:[%s3 + $0x8] sm:$0xff]
  %v218 = vld [vmem:[%s3 + $0x10] sm:$0xff]
  %v219 = vld [vmem:[%s3 + $0x18] sm:$0xff]
  %v220 = vld [vmem:[%s3 + $0x20] sm:$0xff]
  %v221 = vld [vmem:[%s3 + $0x28] sm:$0xff]
  %v222 = vld [vmem:[%s3 + $0x30] sm:$0xff]
  %v223 = vld [vmem:[%s3 + $0x38] sm:$0xff]
  %v224 = vld [vmem:[%s3 + $0x40] sm:$0x1]
  %vm225 = vcmask 269312
  %v227 = vsel %vm225, %v216, 0
  %v230 = vsel %vm225, %v217, 0
  %v233 = vsel %vm225, %v218, 0
  %v236 = vsel %vm225, %v219, 0
  %v239 = vsel %vm225, %v220, 0
  %v242 = vsel %vm225, %v221, 0
  %v245 = vsel %vm225, %v222, 0
  %v248 = vsel %vm225, %v223, 0
  %v251 = vsel %vm225, %v224, 0
  %vm253 = vcmask 1040384
  %v255 = vsel %vm253, %v212, 0
  %v258 = vsel %vm253, %v213, 0
  %v261 = vsel %vm253, %v214, 0
  %v264 = vsel %vm253, %v215, 0
  %266 = vmatpush.msra.mxu0 0.0
  %267 = vmatpush.msra.mxu0 0.0
  %268 = vmatpush.msra.mxu0 0.0
  %269 = vmatpush.msra.mxu0 0.0
  %270 = vmatpush.msra.mxu0 0.0
  %271 = vmatpush.msra.mxu0 0.0
  %272 = vmatpush.msra.mxu0 0.0
  %273 = vmatpush.msra.mxu0 0.0
  %274 = vmatpush.msra.mxu0 0.0
  %275 = vmatpush.msra.mxu0 0.0
  %276 = vmatpush.msra.mxu0 0.0
  %277 = vmatpush.msra.mxu0 %v255
  %278 = vmatpush.msra.mxu0 %v208
  %279 = vmatpush.msra.mxu0 %v204
  %280 = vmatpush.msra.mxu0 %v200
  %281 = vmatpush.msra.mxu0 %v196
  %282 = vmatmul.f32.gmra.mxu0 %v227
  %v283 = vpop.f32.mrf.mxu0
  %v284 = vadd.f32 0.0, %v283
  %285 = vmatmul.f32.gmra.mxu0 %v230
  %v286 = vpop.f32.mrf.mxu0
  %v287 = vadd.f32 0.0, %v286
  %288 = vmatmul.f32.gmra.mxu0 %v233
  %v289 = vpop.f32.mrf.mxu0
  %v290 = vadd.f32 0.0, %v289
  %291 = vmatmul.f32.gmra.mxu0 %v236
  %v292 = vpop.f32.mrf.mxu0
  %v293 = vadd.f32 0.0, %v292
  %294 = vmatmul.f32.gmra.mxu0 %v239
  %v295 = vpop.f32.mrf.mxu0
  %v296 = vadd.f32 0.0, %v295
  %297 = vmatmul.f32.gmra.mxu0 %v242
  %v298 = vpop.f32.mrf.mxu0
  %v299 = vadd.f32 0.0, %v298
  %300 = vmatmul.f32.gmra.mxu0 %v245
  %v301 = vpop.f32.mrf.mxu0
  %v302 = vadd.f32 0.0, %v301
  %303 = vmatmul.f32.gmra.mxu0 %v248
  %v304 = vpop.f32.mrf.mxu0
  %v305 = vadd.f32 0.0, %v304
  %306 = vmatmul.f32.gmra.mxu0 %v251
  %v307 = vpop.f32.mrf.mxu0
  %v308 = vadd.f32 0.0, %v307
  %309 = vdwg.mxu0
  %310 = vmatpush.msra.mxu0 0.0
  %311 = vmatpush.msra.mxu0 0.0
  %312 = vmatpush.msra.mxu0 0.0
  %313 = vmatpush.msra.mxu0 0.0
  %314 = vmatpush.msra.mxu0 0.0
  %315 = vmatpush.msra.mxu0 0.0
  %316 = vmatpush.msra.mxu0 0.0
  %317 = vmatpush.msra.mxu0 0.0
  %318 = vmatpush.msra.mxu0 0.0
  %319 = vmatpush.msra.mxu0 0.0
  %320 = vmatpush.msra.mxu0 0.0
  %321 = vmatpush.msra.mxu0 %v258
  %322 = vmatpush.msra.mxu0 %v209
  %323 = vmatpush.msra.mxu0 %v205
  %324 = vmatpush.msra.mxu0 %v201
  %325 = vmatpush.msra.mxu0 %v197
  %326 = vmatmul.f32.gmra.mxu0 %v227
  %v327 = vpop.f32.mrf.mxu0
  %v328 = vadd.f32 0.0, %v327
  %329 = vmatmul.f32.gmra.mxu0 %v230
  %v330 = vpop.f32.mrf.mxu0
  %v331 = vadd.f32 0.0, %v330
  %332 = vmatmul.f32.gmra.mxu0 %v233
  %v333 = vpop.f32.mrf.mxu0
  %v334 = vadd.f32 0.0, %v333
  %335 = vmatmul.f32.gmra.mxu0 %v236
  %v336 = vpop.f32.mrf.mxu0
  %v337 = vadd.f32 0.0, %v336
  %338 = vmatmul.f32.gmra.mxu0 %v239
  %v339 = vpop.f32.mrf.mxu0
  %v340 = vadd.f32 0.0, %v339
  %341 = vmatmul.f32.gmra.mxu0 %v242
  %v342 = vpop.f32.mrf.mxu0
  %v343 = vadd.f32 0.0, %v342
  %344 = vmatmul.f32.gmra.mxu0 %v245
  %v345 = vpop.f32.mrf.mxu0
  %v346 = vadd.f32 0.0, %v345
  %347 = vmatmul.f32.gmra.mxu0 %v248
  %v348 = vpop.f32.mrf.mxu0
  %v349 = vadd.f32 0.0, %v348
  %350 = vmatmul.f32.gmra.mxu0 %v251
  %v351 = vpop.f32.mrf.mxu0
  %v352 = vadd.f32 0.0, %v351
  %353 = vdwg.mxu0
  %354 = vmatpush.msra.mxu0 0.0
  %355 = vmatpush.msra.mxu0 0.0
  %356 = vmatpush.msra.mxu0 0.0
  %357 = vmatpush.msra.mxu0 0.0
  %358 = vmatpush.msra.mxu0 0.0
  %359 = vmatpush.msra.mxu0 0.0
  %360 = vmatpush.msra.mxu0 0.0
  %361 = vmatpush.msra.mxu0 0.0
  %362 = vmatpush.msra.mxu0 0.0
  %363 = vmatpush.msra.mxu0 0.0
  %364 = vmatpush.msra.mxu0 0.0
  %365 = vmatpush.msra.mxu0 %v261
  %366 = vmatpush.msra.mxu0 %v210
  %367 = vmatpush.msra.mxu0 %v206
  %368 = vmatpush.msra.mxu0 %v202
  %369 = vmatpush.msra.mxu0 %v198
  %370 = vmatmul.f32.gmra.mxu0 %v227
  %v371 = vpop.f32.mrf.mxu0
  %v372 = vadd.f32 0.0, %v371
  %373 = vmatmul.f32.gmra.mxu0 %v230
  %v374 = vpop.f32.mrf.mxu0
  %v375 = vadd.f32 0.0, %v374
  %376 = vmatmul.f32.gmra.mxu0 %v233
  %v377 = vpop.f32.mrf.mxu0
  %v378 = vadd.f32 0.0, %v377
  %379 = vmatmul.f32.gmra.mxu0 %v236
  %v380 = vpop.f32.mrf.mxu0
  %v381 = vadd.f32 0.0, %v380
  %382 = vmatmul.f32.gmra.mxu0 %v239
  %v383 = vpop.f32.mrf.mxu0
  %v384 = vadd.f32 0.0, %v383
  %385 = vmatmul.f32.gmra.mxu0 %v242
  %v386 = vpop.f32.mrf.mxu0
  %v387 = vadd.f32 0.0, %v386
  %388 = vmatmul.f32.gmra.mxu0 %v245
  %v389 = vpop.f32.mrf.mxu0
  %v390 = vadd.f32 0.0, %v389
  %391 = vmatmul.f32.gmra.mxu0 %v248
  %v392 = vpop.f32.mrf.mxu0
  %v393 = vadd.f32 0.0, %v392
  %394 = vmatmul.f32.gmra.mxu0 %v251
  %v395 = vpop.f32.mrf.mxu0
  %v396 = vadd.f32 0.0, %v395
  %397 = vdwg.mxu0
  %398 = vmatpush.msra.mxu0 0.0
  %399 = vmatpush.msra.mxu0 0.0
  %400 = vmatpush.msra.mxu0 0.0
  %401 = vmatpush.msra.mxu0 0.0
  %402 = vmatpush.msra.mxu0 0.0
  %403 = vmatpush.msra.mxu0 0.0
  %404 = vmatpush.msra.mxu0 0.0
  %405 = vmatpush.msra.mxu0 0.0
  %406 = vmatpush.msra.mxu0 0.0
  %407 = vmatpush.msra.mxu0 0.0
  %408 = vmatpush.msra.mxu0 0.0
  %409 = vmatpush.msra.mxu0 %v264
  %410 = vmatpush.msra.mxu0 %v211
  %411 = vmatpush.msra.mxu0 %v207
  %412 = vmatpush.msra.mxu0 %v203
  %413 = vmatpush.msra.mxu0 %v199
  %414 = vmatmul.f32.gmra.mxu0 %v227
  %v415 = vpop.f32.mrf.mxu0
  %v416 = vadd.f32 0.0, %v415
  %417 = vmatmul.f32.gmra.mxu0 %v230
  %v418 = vpop.f32.mrf.mxu0
  %v419 = vadd.f32 0.0, %v418
  %420 = vmatmul.f32.gmra.mxu0 %v233
  %v421 = vpop.f32.mrf.mxu0
  %v422 = vadd.f32 0.0, %v421
  %423 = vmatmul.f32.gmra.mxu0 %v236
  %v424 = vpop.f32.mrf.mxu0
  %v425 = vadd.f32 0.0, %v424
  %426 = vmatmul.f32.gmra.mxu0 %v239
  %v427 = vpop.f32.mrf.mxu0
  %v428 = vadd.f32 0.0, %v427
  %429 = vmatmul.f32.gmra.mxu0 %v242
  %v430 = vpop.f32.mrf.mxu0
  %v431 = vadd.f32 0.0, %v430
  %432 = vmatmul.f32.gmra.mxu0 %v245
  %v433 = vpop.f32.mrf.mxu0
  %v434 = vadd.f32 0.0, %v433
  %435 = vmatmul.f32.gmra.mxu0 %v248
  %v436 = vpop.f32.mrf.mxu0
  %v437 = vadd.f32 0.0, %v436
  %438 = vmatmul.f32.gmra.mxu0 %v251
  %v439 = vpop.f32.mrf.mxu0
  %v440 = vadd.f32 0.0, %v439
  %441 = vdwg.mxu0
  %v442 = vmax.f32 %v284, 0.0
  %v443 = vmax.f32 %v328, 0.0
  %v444 = vmax.f32 %v372, 0.0
  %v445 = vmax.f32 %v416, 0.0
  %v446 = vmax.f32 %v287, 0.0
  %v447 = vmax.f32 %v331, 0.0
  %v448 = vmax.f32 %v375, 0.0
  %v449 = vmax.f32 %v419, 0.0
  %v450 = vmax.f32 %v290, 0.0
  %v451 = vmax.f32 %v334, 0.0
  %v452 = vmax.f32 %v378, 0.0
  %v453 = vmax.f32 %v422, 0.0
  %v454 = vmax.f32 %v293, 0.0
  %v455 = vmax.f32 %v337, 0.0
  %v456 = vmax.f32 %v381, 0.0
  %v457 = vmax.f32 %v425, 0.0
  %v458 = vmax.f32 %v296, 0.0
  %v459 = vmax.f32 %v340, 0.0
  %v460 = vmax.f32 %v384, 0.0
  %v461 = vmax.f32 %v428, 0.0
  %v462 = vmax.f32 %v299, 0.0
  %v463 = vmax.f32 %v343, 0.0
  %v464 = vmax.f32 %v387, 0.0
  %v465 = vmax.f32 %v431, 0.0
  %v466 = vmax.f32 %v302, 0.0
  %v467 = vmax.f32 %v346, 0.0
  %v468 = vmax.f32 %v390, 0.0
  %v469 = vmax.f32 %v434, 0.0
  %v470 = vmax.f32 %v305, 0.0
  %v471 = vmax.f32 %v349, 0.0
  %v472 = vmax.f32 %v393, 0.0
  %v473 = vmax.f32 %v437, 0.0
  %v474 = vmax.f32 %v308, 0.0
  %v475 = vmax.f32 %v352, 0.0
  %v476 = vmax.f32 %v396, 0.0
  %v477 = vmax.f32 %v440, 0.0
  %v478 = vld [vmem:[%s3 + $0xa0] sm:$0xff]
  %v479 = vld [vmem:[%s3 + $0xa8] sm:$0xff]
  %v480 = vld [vmem:[%s3 + $0xb0] sm:$0xff]
  %vm481 = vcmask 531456
  %v483 = vsel %vm481, %v478, 0
  %v486 = vsel %vm481, %v479, 0
  %v489 = vsel %vm481, %v480, 0
  %v492 = vsel %vm253, %v474, 0
  %v495 = vsel %vm253, %v475, 0
  %v498 = vsel %vm253, %v476, 0
  %v501 = vsel %vm253, %v477, 0
  %503 = vmatpush.msra.mxu0 0.0
  %504 = vmatpush.msra.mxu0 0.0
  %505 = vmatpush.msra.mxu0 0.0
  %506 = vmatpush.msra.mxu0 0.0
  %507 = vmatpush.msra.mxu0 0.0
  %508 = vmatpush.msra.mxu0 0.0
  %509 = vmatpush.msra.mxu0 0.0
  %510 = vmatpush.msra.mxu0 %v492
  %511 = vmatpush.msra.mxu0 %v470
  %512 = vmatpush.msra.mxu0 %v466
  %513 = vmatpush.msra.mxu0 %v462
  %514 = vmatpush.msra.mxu0 %v458
  %515 = vmatpush.msra.mxu0 %v454
  %516 = vmatpush.msra.mxu0 %v450
  %517 = vmatpush.msra.mxu0 %v446
  %518 = vmatpush.msra.mxu0 %v442
  %519 = vmatmul.f32.gmra.mxu0 %v483
  %v520 = vpop.f32.mrf.mxu0
  %v521 = vadd.f32 0.0, %v520
  %522 = vmatmul.f32.gmra.mxu0 %v486
  %v523 = vpop.f32.mrf.mxu0
  %v524 = vadd.f32 0.0, %v523
  %525 = vmatmul.f32.gmra.mxu0 %v489
  %v526 = vpop.f32.mrf.mxu0
  %v527 = vadd.f32 0.0, %v526
  %528 = vdwg.mxu0
  %529 = vmatpush.msra.mxu0 0.0
  %530 = vmatpush.msra.mxu0 0.0
  %531 = vmatpush.msra.mxu0 0.0
  %532 = vmatpush.msra.mxu0 0.0
  %533 = vmatpush.msra.mxu0 0.0
  %534 = vmatpush.msra.mxu0 0.0
  %535 = vmatpush.msra.mxu0 0.0
  %536 = vmatpush.msra.mxu0 %v495
  %537 = vmatpush.msra.mxu0 %v471
  %538 = vmatpush.msra.mxu0 %v467
  %539 = vmatpush.msra.mxu0 %v463
  %540 = vmatpush.msra.mxu0 %v459
  %541 = vmatpush.msra.mxu0 %v455
  %542 = vmatpush.msra.mxu0 %v451
  %543 = vmatpush.msra.mxu0 %v447
  %544 = vmatpush.msra.mxu0 %v443
  %545 = vmatmul.f32.gmra.mxu0 %v483
  %v546 = vpop.f32.mrf.mxu0
  %v547 = vadd.f32 0.0, %v546
  %548 = vmatmul.f32.gmra.mxu0 %v486
  %v549 = vpop.f32.mrf.mxu0
  %v550 = vadd.f32 0.0, %v549
  %551 = vmatmul.f32.gmra.mxu0 %v489
  %v552 = vpop.f32.mrf.mxu0
  %v553 = vadd.f32 0.0, %v552
  %554 = vdwg.mxu0
  %555 = vmatpush.msra.mxu0 0.0
  %556 = vmatpush.msra.mxu0 0.0
  %557 = vmatpush.msra.mxu0 0.0
  %558 = vmatpush.msra.mxu0 0.0
  %559 = vmatpush.msra.mxu0 0.0
  %560 = vmatpush.msra.mxu0 0.0
  %561 = vmatpush.msra.mxu0 0.0
  %562 = vmatpush.msra.mxu0 %v498
  %563 = vmatpush.msra.mxu0 %v472
  %564 = vmatpush.msra.mxu0 %v468
  %565 = vmatpush.msra.mxu0 %v464
  %566 = vmatpush.msra.mxu0 %v460
  %567 = vmatpush.msra.mxu0 %v456
  %568 = vmatpush.msra.mxu0 %v452
  %569 = vmatpush.msra.mxu0 %v448
  %570 = vmatpush.msra.mxu0 %v444
  %571 = vmatmul.f32.gmra.mxu0 %v483
  %v572 = vpop.f32.mrf.mxu0
  %v573 = vadd.f32 0.0, %v572
  %574 = vmatmul.f32.gmra.mxu0 %v486
  %v575 = vpop.f32.mrf.mxu0
  %v576 = vadd.f32 0.0, %v575
  %577 = vmatmul.f32.gmra.mxu0 %v489
  %v578 = vpop.f32.mrf.mxu0
  %v579 = vadd.f32 0.0, %v578
  %580 = vdwg.mxu0
  %581 = vmatpush.msra.mxu0 0.0
  %582 = vmatpush.msra.mxu0 0.0
  %583 = vmatpush.msra.mxu0 0.0
  %584 = vmatpush.msra.mxu0 0.0
  %585 = vmatpush.msra.mxu0 0.0
  %586 = vmatpush.msra.mxu0 0.0
  %587 = vmatpush.msra.mxu0 0.0
  %588 = vmatpush.msra.mxu0 %v501
  %589 = vmatpush.msra.mxu0 %v473
  %590 = vmatpush.msra.mxu0 %v469
  %591 = vmatpush.msra.mxu0 %v465
  %592 = vmatpush.msra.mxu0 %v461
  %593 = vmatpush.msra.mxu0 %v457
  %594 = vmatpush.msra.mxu0 %v453
  %595 = vmatpush.msra.mxu0 %v449
  %596 = vmatpush.msra.mxu0 %v445
  %597 = vmatmul.f32.gmra.mxu0 %v483
  %v598 = vpop.f32.mrf.mxu0
  %v599 = vadd.f32 0.0, %v598
  %600 = vmatmul.f32.gmra.mxu0 %v486
  %v601 = vpop.f32.mrf.mxu0
  %v602 = vadd.f32 0.0, %v601
  %603 = vmatmul.f32.gmra.mxu0 %v489
  %v604 = vpop.f32.mrf.mxu0
  %v605 = vadd.f32 0.0, %v604
  %606 = vdwg.mxu0
  %607 = vrot.lane.b32.xlu0 %v521, 8
  %v608 = vpop.permute.xlu0 %607
  %609 = vrot.lane.b32.xlu0 %v524, 8
  %v610 = vpop.permute.xlu0 %609
  %611 = vrot.lane.b32.xlu0 %v527, 8
  %v612 = vpop.permute.xlu0 %611
  %613 = vrot.lane.b32.xlu0 %v547, 8
  %v614 = vpop.permute.xlu0 %613
  %615 = vrot.lane.b32.xlu0 %v550, 8
  %v616 = vpop.permute.xlu0 %615
  %617 = vrot.lane.b32.xlu0 %v553, 8
  %v618 = vpop.permute.xlu0 %617
  %619 = vrot.lane.b32.xlu0 %v573, 8
  %v620 = vpop.permute.xlu0 %619
  %621 = vrot.lane.b32.xlu0 %v576, 8
  %v622 = vpop.permute.xlu0 %621
  %623 = vrot.lane.b32.xlu0 %v579, 8
  %v624 = vpop.permute.xlu0 %623
  %625 = vrot.lane.b32.xlu0 %v599, 8
  %v626 = vpop.permute.xlu0 %625
  %627 = vrot.lane.b32.xlu0 %v602, 8
  %v628 = vpop.permute.xlu0 %627
  %629 = vrot.lane.b32.xlu0 %v605, 8
  %v630 = vpop.permute.xlu0 %629
  %v631 = vlaneseq
  %v632 = vand.u32 %v631, 127
  %vm633 = vcmp.lt.s32.totalorder %v632, 8
  %v634 = vsel %vm633, %v620, %v626
  %v635 = vsel %vm633, %v622, %v628
  %v636 = vsel %vm633, %v624, %v630
  %v637 = vsel %vm633, %v614, %v620
  %v638 = vsel %vm633, %v616, %v622
  %v639 = vsel %vm633, %v618, %v624
  %v640 = vsel %vm633, %v608, %v614
  %v641 = vsel %vm633, %v610, %v616
  %v642 = vsel %vm633, %v612, %v618
  %v643 = vsel %vm633, %v626, %v608
  %v644 = vsel %vm633, %v628, %v610
  %v645 = vsel %vm633, %v630, %v612
  %v646 = vmax.f32 %v521, %v643
  %v647 = vmax.f32 %v547, %v640
  %v648 = vmax.f32 %v573, %v637
  %v649 = vmax.f32 %v599, %v634
  %v650 = vmax.f32 %v524, %v644
  %v651 = vmax.f32 %v550, %v641
  %v652 = vmax.f32 %v576, %v638
  %v653 = vmax.f32 %v602, %v635
  %v654 = vmax.f32 %v527, %v645
  %v655 = vmax.f32 %v553, %v642
  %v656 = vmax.f32 %v579, %v639
  %v657 = vmax.f32 %v605, %v636
  %658 = vrot.lane.b32.xlu0 %v646, 16
  %v659 = vpop.permute.xlu0 %658
  %660 = vrot.lane.b32.xlu0 %v650, 16
  %v661 = vpop.permute.xlu0 %660
  %662 = vrot.lane.b32.xlu0 %v654, 16
  %v663 = vpop.permute.xlu0 %662
  %664 = vrot.lane.b32.xlu0 %v647, 16
  %v665 = vpop.permute.xlu0 %664
  %666 = vrot.lane.b32.xlu0 %v651, 16
  %v667 = vpop.permute.xlu0 %666
  %668 = vrot.lane.b32.xlu0 %v655, 16
  %v669 = vpop.permute.xlu0 %668
  %670 = vrot.lane.b32.xlu0 %v648, 16
  %v671 = vpop.permute.xlu0 %670
  %672 = vrot.lane.b32.xlu0 %v652, 16
  %v673 = vpop.permute.xlu0 %672
  %674 = vrot.lane.b32.xlu0 %v656, 16
  %v675 = vpop.permute.xlu0 %674
  %676 = vrot.lane.b32.xlu0 %v649, 16
  %v677 = vpop.permute.xlu0 %676
  %678 = vrot.lane.b32.xlu0 %v653, 16
  %v679 = vpop.permute.xlu0 %678
  %680 = vrot.lane.b32.xlu0 %v657, 16
  %v681 = vpop.permute.xlu0 %680
  %vm682 = vcmp.lt.s32.totalorder %v632, 16
  %v683 = vsel %vm682, %v671, %v677
  %v684 = vsel %vm682, %v673, %v679
  %v685 = vsel %vm682, %v675, %v681
  %v686 = vsel %vm682, %v665, %v671
  %v687 = vsel %vm682, %v667, %v673
  %v688 = vsel %vm682, %v669, %v675
  %v689 = vsel %vm682, %v659, %v665
  %v690 = vsel %vm682, %v661, %v667
  %v691 = vsel %vm682, %v663, %v669
  %v692 = vsel %vm682, %v677, %v659
  %v693 = vsel %vm682, %v679, %v661
  %v694 = vsel %vm682, %v681, %v663
  %v695 = vmax.f32 %v646, %v692
  %v696 = vmax.f32 %v647, %v689
  %v697 = vmax.f32 %v648, %v686
  %v698 = vmax.f32 %v649, %v683
  %v699 = vmax.f32 %v650, %v693
  %v700 = vmax.f32 %v651, %v690
  %v701 = vmax.f32 %v652, %v687
  %v702 = vmax.f32 %v653, %v684
  %v703 = vmax.f32 %v654, %v694
  %v704 = vmax.f32 %v655, %v691
  %v705 = vmax.f32 %v656, %v688
  %v706 = vmax.f32 %v657, %v685
  %707 = vrot.lane.b32.xlu0 %v695, 32
  %v708 = vpop.permute.xlu0 %707
  %709 = vrot.lane.b32.xlu0 %v699, 32
  %v710 = vpop.permute.xlu0 %709
  %711 = vrot.lane.b32.xlu0 %v703, 32
  %v712 = vpop.permute.xlu0 %711
  %713 = vrot.lane.b32.xlu0 %v696, 32
  %v714 = vpop.permute.xlu0 %713
  %715 = vrot.lane.b32.xlu0 %v700, 32
  %v716 = vpop.permute.xlu0 %715
  %717 = vrot.lane.b32.xlu0 %v704, 32
  %v718 = vpop.permute.xlu0 %717
  %719 = vrot.lane.b32.xlu0 %v697, 32
  %v720 = vpop.permute.xlu0 %719
  %721 = vrot.lane.b32.xlu0 %v701, 32
  %v722 = vpop.permute.xlu0 %721
  %723 = vrot.lane.b32.xlu0 %v705, 32
  %v724 = vpop.permute.xlu0 %723
  %725 = vrot.lane.b32.xlu0 %v698, 32
  %v726 = vpop.permute.xlu0 %725
  %727 = vrot.lane.b32.xlu0 %v702, 32
  %v728 = vpop.permute.xlu0 %727
  %729 = vrot.lane.b32.xlu0 %v706, 32
  %v730 = vpop.permute.xlu0 %729
  %vm731 = vcmp.lt.s32.totalorder %v632, 32
  %v732 = vsel %vm731, %v720, %v726
  %v733 = vsel %vm731, %v722, %v728
  %v734 = vsel %vm731, %v724, %v730
  %v735 = vsel %vm731, %v714, %v720
  %v736 = vsel %vm731, %v716, %v722
  %v737 = vsel %vm731, %v718, %v724
  %v738 = vsel %vm731, %v708, %v714
  %v739 = vsel %vm731, %v710, %v716
  %v740 = vsel %vm731, %v712, %v718
  %v741 = vsel %vm731, %v726, %v708
  %v742 = vsel %vm731, %v728, %v710
  %v743 = vsel %vm731, %v730, %v712
  %v744 = vmax.f32 %v695, %v741
  %v745 = vmax.f32 %v696, %v738
  %v746 = vmax.f32 %v697, %v735
  %v747 = vmax.f32 %v698, %v732
  %v748 = vmax.f32 %v699, %v742
  %v749 = vmax.f32 %v700, %v739
  %v750 = vmax.f32 %v701, %v736
  %v751 = vmax.f32 %v702, %v733
  %v752 = vmax.f32 %v703, %v743
  %v753 = vmax.f32 %v704, %v740
  %v754 = vmax.f32 %v705, %v737
  %v755 = vmax.f32 %v706, %v734
  %756 = vrot.lane.b32.xlu0 %v744, 64
  %v757 = vpop.permute.xlu0 %756
  %758 = vrot.lane.b32.xlu0 %v748, 64
  %v759 = vpop.permute.xlu0 %758
  %760 = vrot.lane.b32.xlu0 %v752, 64
  %v761 = vpop.permute.xlu0 %760
  %762 = vrot.lane.b32.xlu0 %v745, 64
  %v763 = vpop.permute.xlu0 %762
  %764 = vrot.lane.b32.xlu0 %v749, 64
  %v765 = vpop.permute.xlu0 %764
  %766 = vrot.lane.b32.xlu0 %v753, 64
  %v767 = vpop.permute.xlu0 %766
  %768 = vrot.lane.b32.xlu0 %v746, 64
  %v769 = vpop.permute.xlu0 %768
  %770 = vrot.lane.b32.xlu0 %v750, 64
  %v771 = vpop.permute.xlu0 %770
  %772 = vrot.lane.b32.xlu0 %v754, 64
  %v773 = vpop.permute.xlu0 %772
  %774 = vrot.lane.b32.xlu0 %v747, 64
  %v775 = vpop.permute.xlu0 %774
  %776 = vrot.lane.b32.xlu0 %v751, 64
  %v777 = vpop.permute.xlu0 %776
  %778 = vrot.lane.b32.xlu0 %v755, 64
  %v779 = vpop.permute.xlu0 %778
  %vm780 = vcmp.lt.s32.totalorder %v632, 64
  %v781 = vsel %vm780, %v769, %v775
  %v782 = vsel %vm780, %v771, %v777
  %v783 = vsel %vm780, %v773, %v779
  %v784 = vsel %vm780, %v763, %v769
  %v785 = vsel %vm780, %v765, %v771
  %v786 = vsel %vm780, %v767, %v773
  %v787 = vsel %vm780, %v757, %v763
  %v788 = vsel %vm780, %v759, %v765
  %v789 = vsel %vm780, %v761, %v767
  %v790 = vsel %vm780, %v775, %v757
  %v791 = vsel %vm780, %v777, %v759
  %v792 = vsel %vm780, %v779, %v761
  %v793 = vmax.f32 %v744, %v790
  %v794 = vmax.f32 %v745, %v787
  %v795 = vmax.f32 %v746, %v784
  %v796 = vmax.f32 %v747, %v781
  %v797 = vmax.f32 %v748, %v791
  %v798 = vmax.f32 %v749, %v788
  %v799 = vmax.f32 %v750, %v785
  %v800 = vmax.f32 %v751, %v782
  %v801 = vmax.f32 %v752, %v792
  %v802 = vmax.f32 %v753, %v789
  %v803 = vmax.f32 %v754, %v786
  %v804 = vmax.f32 %v755, %v783
  %v805 = vmax.f32 %v793, %v796
  %v806 = vmax.f32 %v794, %v793
  %v807 = vmax.f32 %v795, %v794
  %v808 = vmax.f32 %v796, %v795
  %v809 = vmax.f32 %v797, %v800
  %v810 = vmax.f32 %v798, %v797
  %v811 = vmax.f32 %v799, %v798
  %v812 = vmax.f32 %v800, %v799
  %v813 = vmax.f32 %v801, %v804
  %v814 = vmax.f32 %v802, %v801
  %v815 = vmax.f32 %v803, %v802
  %v816 = vmax.f32 %v804, %v803
  %v817 = vmax.f32 %v805, %v807
  %v818 = vmax.f32 %v806, %v808
  %v819 = vmax.f32 %v809, %v811
  %v820 = vmax.f32 %v810, %v812
  %v821 = vmax.f32 %v813, %v815
  %v822 = vmax.f32 %v814, %v816
  %v823 = vadd.s32 %v632, 128
  %v824 = vadd.s32 %v632, 256
  %v825 = vadd.s32 %v632, 384
  %v826 = vlaneseq
  %v827 = vshrl.u32 %v826, 7
  %vm828 = vcmp.eq.s32.totalorder %v632, %v827
  %vm829 = vcmp.eq.s32.totalorder %v823, %v827
  %vm830 = vcmp.eq.s32.totalorder %v824, %v827
  %vm831 = vcmp.eq.s32.totalorder %v825, %v827
  %v832 = vsel %vm828, 1, 0
  %v833 = vsel %vm829, 1, 0
  %v834 = vsel %vm830, 1, 0
  %v835 = vsel %vm831, 1, 0
  %v836 = vcvt.s32.f32 %v832
  %v837 = vcvt.s32.f32 %v833
  %v838 = vcvt.s32.f32 %v834
  %v839 = vcvt.s32.f32 %v835
  %840 = vmatpush.xpose.msra.mxu0 0.0
  %841 = vmatpush.xpose.msra.mxu0 0.0
  %842 = vmatpush.xpose.msra.mxu0 0.0
  %843 = vmatpush.xpose.msra.mxu0 0.0
  %844 = vmatpush.xpose.msra.mxu0 0.0
  %845 = vmatpush.xpose.msra.mxu0 0.0
  %846 = vmatpush.xpose.msra.mxu0 0.0
  %847 = vmatpush.xpose.msra.mxu0 0.0
  %848 = vmatpush.xpose.msra.mxu0 0.0
  %849 = vmatpush.xpose.msra.mxu0 0.0
  %850 = vmatpush.xpose.msra.mxu0 0.0
  %851 = vmatpush.xpose.msra.mxu0 0.0
  %852 = vmatpush.xpose.msra.mxu0 0.0
  %853 = vmatpush.xpose.msra.mxu0 %v821
  %854 = vmatpush.xpose.msra.mxu0 %v819
  %855 = vmatpush.xpose.msra.mxu0 %v817
  %856 = vmatmul.f32.gmra.mxu0 %v836
  %v857 = vpop.f32.mrf.mxu0
  %v858 = vadd.f32 0.0, %v857
  %859 = vdwg.mxu0
  %860 = vmatpush.xpose.msra.mxu0 0.0
  %861 = vmatpush.xpose.msra.mxu0 0.0
  %862 = vmatpush.xpose.msra.mxu0 0.0
  %863 = vmatpush.xpose.msra.mxu0 0.0
  %864 = vmatpush.xpose.msra.mxu0 0.0
  %865 = vmatpush.xpose.msra.mxu0 0.0
  %866 = vmatpush.xpose.msra.mxu0 0.0
  %867 = vmatpush.xpose.msra.mxu0 0.0
  %868 = vmatpush.xpose.msra.mxu0 0.0
  %869 = vmatpush.xpose.msra.mxu0 0.0
  %870 = vmatpush.xpose.msra.mxu0 0.0
  %871 = vmatpush.xpose.msra.mxu0 0.0
  %872 = vmatpush.xpose.msra.mxu0 0.0
  %873 = vmatpush.xpose.msra.mxu0 %v822
  %874 = vmatpush.xpose.msra.mxu0 %v820
  %875 = vmatpush.xpose.msra.mxu0 %v818
  %876 = vmatmul.f32.gmra.mxu0 %v837
  %v877 = vpop.f32.mrf.mxu0
  %v878 = vadd.f32 %v858, %v877
  %879 = vdwg.mxu0
  %880 = vmatpush.xpose.msra.mxu0 0.0
  %881 = vmatpush.xpose.msra.mxu0 0.0
  %882 = vmatpush.xpose.msra.mxu0 0.0
  %883 = vmatpush.xpose.msra.mxu0 0.0
  %884 = vmatpush.xpose.msra.mxu0 0.0
  %885 = vmatpush.xpose.msra.mxu0 0.0
  %886 = vmatpush.xpose.msra.mxu0 0.0
  %887 = vmatpush.xpose.msra.mxu0 0.0
  %888 = vmatpush.xpose.msra.mxu0 0.0
  %889 = vmatpush.xpose.msra.mxu0 0.0
  %890 = vmatpush.xpose.msra.mxu0 0.0
  %891 = vmatpush.xpose.msra.mxu0 0.0
  %892 = vmatpush.xpose.msra.mxu0 0.0
  %893 = vmatpush.xpose.msra.mxu0 %v821
  %894 = vmatpush.xpose.msra.mxu0 %v819
  %895 = vmatpush.xpose.msra.mxu0 %v817
  %896 = vmatmul.f32.gmra.mxu0 %v838
  %v897 = vpop.f32.mrf.mxu0
  %v898 = vadd.f32 %v878, %v897
  %899 = vdwg.mxu0
  %900 = vmatpush.xpose.msra.mxu0 0.0
  %901 = vmatpush.xpose.msra.mxu0 0.0
  %902 = vmatpush.xpose.msra.mxu0 0.0
  %903 = vmatpush.xpose.msra.mxu0 0.0
  %904 = vmatpush.xpose.msra.mxu0 0.0
  %905 = vmatpush.xpose.msra.mxu0 0.0
  %906 = vmatpush.xpose.msra.mxu0 0.0
  %907 = vmatpush.xpose.msra.mxu0 0.0
  %908 = vmatpush.xpose.msra.mxu0 0.0
  %909 = vmatpush.xpose.msra.mxu0 0.0
  %910 = vmatpush.xpose.msra.mxu0 0.0
  %911 = vmatpush.xpose.msra.mxu0 0.0
  %912 = vmatpush.xpose.msra.mxu0 0.0
  %913 = vmatpush.xpose.msra.mxu0 %v822
  %914 = vmatpush.xpose.msra.mxu0 %v820
  %915 = vmatpush.xpose.msra.mxu0 %v818
  %916 = vmatmul.f32.gmra.mxu0 %v839
  %v917 = vpop.f32.mrf.mxu0
  %v918 = vadd.f32 %v898, %v917
  %919 = vdwg.mxu0
  %v920 = vld [vmem:[%s2] sm:$0xff]
  %vm921 = vcmp.ge.s32.totalorder %v632, 6
  %v922 = vsel %vm921, %v920, 1.0
  %v923 = vlog2.pop %v922
  %v924 = vmul.f32 %v923, 0.6931472
  %vm925 = vcmp.ge.s32.totalorder %v632, 9
  %v926 = vsel %vm925, %v924, %v920
  %v927 = vld [vmem:[%s3] sm:$0xff]
  %v928 = vld [vmem:[%s3 + $0x8] sm:$0xf]
  %v929 = vperm.slane %v928, 3
  %932 = vrot.lane.b32.xlu0 %v927, 12
  %v933 = vpop.permute.xlu0 %932
  %934 = vrot.lane.b32.xlu0 %v928, 12
  %v935 = vpop.permute.xlu0 %934
  %938 = vrot.lane.b32.xlu0 %v929, 12
  %v939 = vpop.permute.xlu0 %938
  %vm941 = vcmask 89088
  %v943 = vsel %vm941, %v926, 0
  %vm945 = vcmask 1042432
  %v946 = vsel %vm945, %v935, 0
  %948 = vmatpush.msra.mxu0 0.0
  %949 = vmatpush.msra.mxu0 0.0
  %950 = vmatpush.msra.mxu0 0.0
  %951 = vmatpush.msra.mxu0 0.0
  %952 = vmatpush.msra.mxu0 0.0
  %953 = vmatpush.msra.mxu0 0.0
  %954 = vmatpush.msra.mxu0 0.0
  %955 = vmatpush.msra.mxu0 0.0
  %956 = vmatpush.msra.mxu0 0.0
  %957 = vmatpush.msra.mxu0 0.0
  %958 = vmatpush.msra.mxu0 0.0
  %959 = vmatpush.msra.mxu0 0.0
  %960 = vmatpush.msra.mxu0 0.0
  %961 = vmatpush.msra.mxu0 0.0
  %962 = vmatpush.msra.mxu0 %v946
  %963 = vmatpush.msra.mxu0 %v933
  %964 = vmatmul.f32.gmra.mxu0 %v943
  %v965 = vpop.f32.mrf.mxu0
  %v966 = vadd.f32 %v939, %v965
  %967 = vdwg.mxu0
  %v968 = vld [vmem:[%s3 + $0x50] sm:$0xff]
  %v969 = vld [vmem:[%s3 + $0x58] sm:$0xff]
  %v970 = vld [vmem:[%s3 + $0x60] sm:$0xff]
  %v971 = vld [vmem:[%s3 + $0x68] sm:$0xff]
  %v972 = vld [vmem:[%s3 + $0x70] sm:$0x1]
  %vm973 = vcmask 64512
  %v975 = vsel %vm973, %v966, 0
  %977 = vmatpush.msra.mxu0 0.0
  %978 = vmatpush.msra.mxu0 0.0
  %979 = vmatpush.msra.mxu0 0.0
  %980 = vmatpush.msra.mxu0 0.0
  %981 = vmatpush.msra.mxu0 0.0
  %982 = vmatpush.msra.mxu0 0.0
  %983 = vmatpush.msra.mxu0 0.0
  %984 = vmatpush.msra.mxu0 0.0
  %985 = vmatpush.msra.mxu0 0.0
  %986 = vmatpush.msra.mxu0 0.0
  %987 = vmatpush.msra.mxu0 0.0
  %988 = vmatpush.msra.mxu0 0.0
  %989 = vmatpush.msra.mxu0 0.0
  %990 = vmatpush.msra.mxu0 0.0
  %991 = vmatpush.msra.mxu0 0.0
  %992 = vmatpush.msra.mxu0 %v971
  %993 = vmatmul.f32.gmra.mxu0 %v975
  %v994 = vpop.f32.mrf.mxu0
  %v995 = vadd.f32 0.0, %v994
  %996 = vdwg.mxu0
  %vm997 = vcmask 195584
  %v999 = vsel %vm997, %v918, 0
  %1001 = vmatpush.msra.mxu0 0.0
  %1002 = vmatpush.msra.mxu0 0.0
  %1003 = vmatpush.msra.mxu0 0.0
  %1004 = vmatpush.msra.mxu0 0.0
  %1005 = vmatpush.msra.mxu0 0.0
  %1006 = vmatpush.msra.mxu0 0.0
  %1007 = vmatpush.msra.mxu0 0.0
  %1008 = vmatpush.msra.mxu0 0.0
  %1009 = vmatpush.msra.mxu0 0.0
  %1010 = vmatpush.msra.mxu0 0.0
  %1011 = vmatpush.msra.mxu0 0.0
  %1012 = vmatpush.msra.mxu0 0.0
  %1013 = vmatpush.msra.mxu0 0.0
  %1014 = vmatpush.msra.mxu0 %v970
  %1015 = vmatpush.msra.mxu0 %v969
  %1016 = vmatpush.msra.mxu0 %v968
  %1017 = vmatmul.f32.gmra.mxu0 %v999
  %v1018 = vpop.f32.mrf.mxu0
  %v1019 = vadd.f32 %v995, %v1018
  %1020 = vdwg.mxu0
  %v1021 = vperm.slane %v972, 0
  %v1022 = vadd.f32 %v1019, %v1021
  %v1023 = vmax.f32 %v1022, 0.0
  %v1024 = vperm.slane %v224, 0
  %1025 = vrot.lane.b32.xlu0 %v216, 88
  %v1026 = vpop.permute.xlu0 %1025
  %1027 = vrot.lane.b32.xlu0 %v217, 88
  %v1028 = vpop.permute.xlu0 %1027
  %1029 = vrot.lane.b32.xlu0 %v218, 88
  %v1030 = vpop.permute.xlu0 %1029
  %1031 = vrot.lane.b32.xlu0 %v219, 88
  %v1032 = vpop.permute.xlu0 %1031
  %1033 = vrot.lane.b32.xlu0 %v220, 88
  %v1034 = vpop.permute.xlu0 %1033
  %1035 = vrot.lane.b32.xlu0 %v221, 88
  %v1036 = vpop.permute.xlu0 %1035
  %1037 = vrot.lane.b32.xlu0 %v222, 88
  %v1038 = vpop.permute.xlu0 %1037
  %1039 = vrot.lane.b32.xlu0 %v223, 88
  %v1040 = vpop.permute.xlu0 %1039
  %1050 = vrot.lane.b32.xlu0 %v1024, 88
  %v1051 = vpop.permute.xlu0 %1050
  %vm1053 = vcmask 523264
  %v1055 = vsel %vm1053, %v1023, 0
  %1057 = vmatpush.msra.mxu0 0.0
  %1058 = vmatpush.msra.mxu0 0.0
  %1059 = vmatpush.msra.mxu0 0.0
  %1060 = vmatpush.msra.mxu0 0.0
  %1061 = vmatpush.msra.mxu0 0.0
  %1062 = vmatpush.msra.mxu0 0.0
  %1063 = vmatpush.msra.mxu0 0.0
  %1064 = vmatpush.msra.mxu0 0.0
  %1065 = vmatpush.msra.mxu0 %v1040
  %1066 = vmatpush.msra.mxu0 %v1038
  %1067 = vmatpush.msra.mxu0 %v1036
  %1068 = vmatpush.msra.mxu0 %v1034
  %1069 = vmatpush.msra.mxu0 %v1032
  %1070 = vmatpush.msra.mxu0 %v1030
  %1071 = vmatpush.msra.mxu0 %v1028
  %1072 = vmatpush.msra.mxu0 %v1026
  %1073 = vmatmul.f32.gmra.mxu0 %v1055
  %v1074 = vpop.f32.mrf.mxu0
  %v1075 = vadd.f32 %v1051, %v1074
  %1076 = vdwg.mxu0
  %v1077 = vmax.f32 %v1075, 0.0
  %v1078 = vld [vmem:[%s3 + $0x28] sm:$0xff]
  %v1079 = vld [vmem:[%s3 + $0x30] sm:$0xff]
  %v1080 = vld [vmem:[%s3 + $0x38] sm:$0xff]
  %v1081 = vld [vmem:[%s3 + $0x40] sm:$0xff]
  %v1082 = vld [vmem:[%s3 + $0x48] sm:$0x1]
  %v1083 = vperm.slane %v1082, 0
  %1088 = vrot.lane.b32.xlu0 %v1078, 24
  %v1089 = vpop.permute.xlu0 %1088
  %1090 = vrot.lane.b32.xlu0 %v1079, 24
  %v1091 = vpop.permute.xlu0 %1090
  %1092 = vrot.lane.b32.xlu0 %v1080, 24
  %v1093 = vpop.permute.xlu0 %1092
  %1094 = vrot.lane.b32.xlu0 %v1081, 24
  %v1095 = vpop.permute.xlu0 %1094
  %1101 = vrot.lane.b32.xlu0 %v1083, 24
  %v1102 = vpop.permute.xlu0 %1101
  %vm1104 = vcmask 261120
  %v1106 = vsel %vm1104, %v1077, 0
  %1108 = vmatpush.msra.mxu0 0.0
  %1109 = vmatpush.msra.mxu0 0.0
  %1110 = vmatpush.msra.mxu0 0.0
  %1111 = vmatpush.msra.mxu0 0.0
  %1112 = vmatpush.msra.mxu0 0.0
  %1113 = vmatpush.msra.mxu0 0.0
  %1114 = vmatpush.msra.mxu0 0.0
  %1115 = vmatpush.msra.mxu0 0.0
  %1116 = vmatpush.msra.mxu0 0.0
  %1117 = vmatpush.msra.mxu0 0.0
  %1118 = vmatpush.msra.mxu0 0.0
  %1119 = vmatpush.msra.mxu0 0.0
  %1120 = vmatpush.msra.mxu0 %v1095
  %1121 = vmatpush.msra.mxu0 %v1093
  %1122 = vmatpush.msra.mxu0 %v1091
  %1123 = vmatpush.msra.mxu0 %v1089
  %1124 = vmatmul.f32.gmra.mxu0 %v1106
  %v1125 = vpop.f32.mrf.mxu0
  %v1126 = vadd.f32 %v1102, %v1125
  %1127 = vdwg.mxu0
  %v1128 = vsel %vm921, %v924, %v920
  %v1129 = vld [vmem:[%s0] sm:$0xff]
  %v1130 = vld [vmem:[%s0 + $0x8] sm:$0xff]
  %1131 = vset.pattern.permute.xlu0 0
  %1132 = vperm.xlu0 %1131, %v1129
  %v1133 = vpop.permute.xlu0 %1132
  %1134 = vset.pattern.permute.xlu0 0
  %1135 = vperm.xlu0 %1134, %v1130
  %v1136 = vpop.permute.xlu0 %1135
  %vm1137 = vcmp.eq.s32.totalorder %v1133, %v632
  %vm1138 = vcmp.eq.s32.totalorder %v1136, %v632
  %v1139 = vsel %vm1137, 1, 0
  %v1140 = vsel %vm1138, 1, 0
  %v1141 = vcvt.s32.f32 %v1139
  %v1142 = vcvt.s32.f32 %v1140
  %1143 = vset.pattern.permute.xlu0 1
  %1144 = vperm.xlu0 %1143, %v1129
  %v1145 = vpop.permute.xlu0 %1144
  %1146 = vset.pattern.permute.xlu0 1
  %1147 = vperm.xlu0 %1146, %v1130
  %v1148 = vpop.permute.xlu0 %1147
  %vm1149 = vcmp.eq.s32.totalorder %v1145, %v632
  %vm1150 = vcmp.eq.s32.totalorder %v1148, %v632
  %v1151 = vsel %vm1149, 1, 0
  %v1152 = vsel %vm1150, 1, 0
  %v1153 = vcvt.s32.f32 %v1151
  %v1154 = vcvt.s32.f32 %v1152
  %v1155 = vsub.f32 %v1141, %v1153
  %v1156 = vsub.f32 %v1142, %v1154
  %v1158 = vsel %vm973, %v1155, 0
  %v1161 = vsel %vm973, %v1156, 0
  %1163 = vmatpush.msra.mxu0 0.0
  %1164 = vmatpush.msra.mxu0 0.0
  %1165 = vmatpush.msra.mxu0 0.0
  %1166 = vmatpush.msra.mxu0 0.0
  %1167 = vmatpush.msra.mxu0 0.0
  %1168 = vmatpush.msra.mxu0 0.0
  %1169 = vmatpush.msra.mxu0 0.0
  %1170 = vmatpush.msra.mxu0 0.0
  %1171 = vmatpush.msra.mxu0 0.0
  %1172 = vmatpush.msra.mxu0 0.0
  %1173 = vmatpush.msra.mxu0 0.0
  %1174 = vmatpush.msra.mxu0 0.0
  %1175 = vmatpush.msra.mxu0 0.0
  %1176 = vmatpush.msra.mxu0 0.0
  %1177 = vmatpush.msra.mxu0 0.0
  %1178 = vmatpush.msra.mxu0 %v1128
  %1179 = vmatmul.f32.gmra.mxu0 %v1158
  %v1180 = vpop.f32.mrf.mxu0
  %v1181 = vadd.f32 0.0, %v1180
  %1182 = vmatmul.f32.gmra.mxu0 %v1161
  %v1183 = vpop.f32.mrf.mxu0
  %v1184 = vadd.f32 0.0, %v1183
  %1185 = vdwg.mxu0
  %v1186 = vld [vmem:[%s3 + $0x78] sm:$0xff]
  %v1187 = vld [vmem:[%s3 + $0x80] sm:$0xf]
  %v1188 = vperm.slane %v1187, 3
  %1191 = vrot.lane.b32.xlu0 %v1186, 64
  %v1192 = vpop.permute.xlu0 %1191
  %1193 = vrot.lane.b32.xlu0 %v1187, 64
  %v1194 = vpop.permute.xlu0 %1193
  %1197 = vrot.lane.b32.xlu0 %v1188, 64
  %v1198 = vpop.permute.xlu0 %1197
  %v1201 = vsel %vm941, %v1181, 0
  %v1204 = vsel %vm941, %v1184, 0
  %v1206 = vsel %vm945, %v1194, 0
  %1208 = vmatpush.msra.mxu0 0.0
  %1209 = vmatpush.msra.mxu0 0.0
  %1210 = vmatpush.msra.mxu0 0.0
  %1211 = vmatpush.msra.mxu0 0.0
  %1212 = vmatpush.msra.mxu0 0.0
  %1213 = vmatpush.msra.mxu0 0.0
  %1214 = vmatpush.msra.mxu0 0.0
  %1215 = vmatpush.msra.mxu0 0.0
  %1216 = vmatpush.msra.mxu0 0.0
  %1217 = vmatpush.msra.mxu0 0.0
  %1218 = vmatpush.msra.mxu0 0.0
  %1219 = vmatpush.msra.mxu0 0.0
  %1220 = vmatpush.msra.mxu0 0.0
  %1221 = vmatpush.msra.mxu0 0.0
  %1222 = vmatpush.msra.mxu0 %v1206
  %1223 = vmatpush.msra.mxu0 %v1192
  %1224 = vmatmul.f32.gmra.mxu0 %v1201
  %v1225 = vpop.f32.mrf.mxu0
  %v1226 = vadd.f32 %v1198, %v1225
  %1227 = vmatmul.f32.gmra.mxu0 %v1204
  %v1228 = vpop.f32.mrf.mxu0
  %v1229 = vadd.f32 %v1198, %v1228
  %1230 = vdwg.mxu0
  %v1231 = vmax.f32 %v1226, 0.0
  %v1232 = vmax.f32 %v1229, 0.0
  %1237 = vrot.lane.b32.xlu0 %v968, 64
  %v1238 = vpop.permute.xlu0 %1237
  %1239 = vrot.lane.b32.xlu0 %v969, 64
  %v1240 = vpop.permute.xlu0 %1239
  %1241 = vrot.lane.b32.xlu0 %v970, 64
  %v1242 = vpop.permute.xlu0 %1241
  %1243 = vrot.lane.b32.xlu0 %v971, 64
  %v1244 = vpop.permute.xlu0 %1243
  %1250 = vrot.lane.b32.xlu0 %v1021, 64
  %v1251 = vpop.permute.xlu0 %1250
  %v1254 = vsel %vm1104, %v1231, 0
  %v1257 = vsel %vm1104, %v1232, 0
  %1259 = vmatpush.msra.mxu0 0.0
  %1260 = vmatpush.msra.mxu0 0.0
  %1261 = vmatpush.msra.mxu0 0.0
  %1262 = vmatpush.msra.mxu0 0.0
  %1263 = vmatpush.msra.mxu0 0.0
  %1264 = vmatpush.msra.mxu0 0.0
  %1265 = vmatpush.msra.mxu0 0.0
  %1266 = vmatpush.msra.mxu0 0.0
  %1267 = vmatpush.msra.mxu0 0.0
  %1268 = vmatpush.msra.mxu0 0.0
  %1269 = vmatpush.msra.mxu0 0.0
  %1270 = vmatpush.msra.mxu0 0.0
  %1271 = vmatpush.msra.mxu0 %v1244
  %1272 = vmatpush.msra.mxu0 %v1242
  %1273 = vmatpush.msra.mxu0 %v1240
  %1274 = vmatpush.msra.mxu0 %v1238
  %1275 = vmatmul.f32.gmra.mxu0 %v1254
  %v1276 = vpop.f32.mrf.mxu0
  %v1277 = vadd.f32 %v1251, %v1276
  %1278 = vmatmul.f32.gmra.mxu0 %v1257
  %v1279 = vpop.f32.mrf.mxu0
  %v1280 = vadd.f32 %v1251, %v1279
  %1281 = vdwg.mxu0
  %v1282 = vmax.f32 %v1277, 0.0
  %v1283 = vmax.f32 %v1280, 0.0
  %1284 = vrot.lane.b32.xlu0 %v968, 32
  %v1285 = vpop.permute.xlu0 %1284
  %1286 = vrot.lane.b32.xlu0 %v969, 32
  %v1287 = vpop.permute.xlu0 %1286
  %1288 = vrot.lane.b32.xlu0 %v970, 32
  %v1289 = vpop.permute.xlu0 %1288
  %1290 = vrot.lane.b32.xlu0 %v971, 32
  %v1291 = vpop.permute.xlu0 %1290
  %1296 = vrot.lane.b32.xlu0 %v1021, 32
  %v1297 = vpop.permute.xlu0 %1296
  %v1300 = vsel %vm1104, %v1282, 0
  %v1303 = vsel %vm1104, %v1283, 0
  %1305 = vmatpush.msra.mxu0 0.0
  %1306 = vmatpush.msra.mxu0 0.0
  %1307 = vmatpush.msra.mxu0 0.0
  %1308 = vmatpush.msra.mxu0 0.0
  %1309 = vmatpush.msra.mxu0 0.0
  %1310 = vmatpush.msra.mxu0 0.0
  %1311 = vmatpush.msra.mxu0 0.0
  %1312 = vmatpush.msra.mxu0 0.0
  %1313 = vmatpush.msra.mxu0 0.0
  %1314 = vmatpush.msra.mxu0 0.0
  %1315 = vmatpush.msra.mxu0 0.0
  %1316 = vmatpush.msra.mxu0 0.0
  %1317 = vmatpush.msra.mxu0 %v1291
  %1318 = vmatpush.msra.mxu0 %v1289
  %1319 = vmatpush.msra.mxu0 %v1287
  %1320 = vmatpush.msra.mxu0 %v1285
  %1321 = vmatmul.f32.gmra.mxu0 %v1300
  %v1322 = vpop.f32.mrf.mxu0
  %v1323 = vadd.f32 %v1297, %v1322
  %1324 = vmatmul.f32.gmra.mxu0 %v1303
  %v1325 = vpop.f32.mrf.mxu0
  %v1326 = vadd.f32 %v1297, %v1325
  %1327 = vdwg.mxu0
  %v1328 = vld [vmem:[%s3 + $0x78] sm:$0xff]
  %v1329 = vld [vmem:[%s3 + $0x80] sm:$0xff]
  %v1330 = vld [vmem:[%s3 + $0x88] sm:$0xff]
  %v1331 = vld [vmem:[%s3 + $0x90] sm:$0xff]
  %v1332 = vld [vmem:[%s3 + $0x98] sm:$0x1]
  %v1333 = vperm.slane %v1332, 0
  %v1335 = vsel %vm1104, %v1323, 0
  %v1338 = vsel %vm1104, %v1326, 0
  %1340 = vmatpush.msra.mxu0 0.0
  %1341 = vmatpush.msra.mxu0 0.0
  %1342 = vmatpush.msra.mxu0 0.0
  %1343 = vmatpush.msra.mxu0 0.0
  %1344 = vmatpush.msra.mxu0 0.0
  %1345 = vmatpush.msra.mxu0 0.0
  %1346 = vmatpush.msra.mxu0 0.0
  %1347 = vmatpush.msra.mxu0 0.0
  %1348 = vmatpush.msra.mxu0 0.0
  %1349 = vmatpush.msra.mxu0 0.0
  %1350 = vmatpush.msra.mxu0 0.0
  %1351 = vmatpush.msra.mxu0 0.0
  %1352 = vmatpush.msra.mxu0 %v1331
  %1353 = vmatpush.msra.mxu0 %v1330
  %1354 = vmatpush.msra.mxu0 %v1329
  %1355 = vmatpush.msra.mxu0 %v1328
  %1356 = vmatmul.f32.gmra.mxu0 %v1335
  %v1357 = vpop.f32.mrf.mxu0
  %v1358 = vadd.f32 %v1333, %v1357
  %1359 = vmatmul.f32.gmra.mxu0 %v1338
  %v1360 = vpop.f32.mrf.mxu0
  %v1361 = vadd.f32 %v1333, %v1360
  %1362 = vdwg.mxu0
  %v1363 = vmax.f32 %v1358, 0.0
  %v1364 = vmax.f32 %v1361, 0.0
  %1365 = vrot.lane.b32.xlu0 %v216, 56
  %v1366 = vpop.permute.xlu0 %1365
  %1367 = vrot.lane.b32.xlu0 %v217, 56
  %v1368 = vpop.permute.xlu0 %1367
  %1369 = vrot.lane.b32.xlu0 %v218, 56
  %v1370 = vpop.permute.xlu0 %1369
  %1371 = vrot.lane.b32.xlu0 %v219, 56
  %v1372 = vpop.permute.xlu0 %1371
  %1373 = vrot.lane.b32.xlu0 %v220, 56
  %v1374 = vpop.permute.xlu0 %1373
  %1375 = vrot.lane.b32.xlu0 %v221, 56
  %v1376 = vpop.permute.xlu0 %1375
  %1377 = vrot.lane.b32.xlu0 %v222, 56
  %v1378 = vpop.permute.xlu0 %1377
  %1379 = vrot.lane.b32.xlu0 %v223, 56
  %v1380 = vpop.permute.xlu0 %1379
  %1389 = vrot.lane.b32.xlu0 %v1024, 56
  %v1390 = vpop.permute.xlu0 %1389
  %v1393 = vsel %vm1053, %v1363, 0
  %v1396 = vsel %vm1053, %v1364, 0
  %1398 = vmatpush.msra.mxu0 0.0
  %1399 = vmatpush.msra.mxu0 0.0
  %1400 = vmatpush.msra.mxu0 0.0
  %1401 = vmatpush.msra.mxu0 0.0
  %1402 = vmatpush.msra.mxu0 0.0
  %1403 = vmatpush.msra.mxu0 0.0
  %1404 = vmatpush.msra.mxu0 0.0
  %1405 = vmatpush.msra.mxu0 0.0
  %1406 = vmatpush.msra.mxu0 %v1380
  %1407 = vmatpush.msra.mxu0 %v1378
  %1408 = vmatpush.msra.mxu0 %v1376
  %1409 = vmatpush.msra.mxu0 %v1374
  %1410 = vmatpush.msra.mxu0 %v1372
  %1411 = vmatpush.msra.mxu0 %v1370
  %1412 = vmatpush.msra.mxu0 %v1368
  %1413 = vmatpush.msra.mxu0 %v1366
  %1414 = vmatmul.f32.gmra.mxu0 %v1393
  %v1415 = vpop.f32.mrf.mxu0
  %v1416 = vadd.f32 %v1390, %v1415
  %1417 = vmatmul.f32.gmra.mxu0 %v1396
  %v1418 = vpop.f32.mrf.mxu0
  %v1419 = vadd.f32 %v1390, %v1418
  %1420 = vdwg.mxu0
  %v1421 = vmax.f32 %v1416, 0.0
  %v1422 = vmax.f32 %v1419, 0.0
  %v1423 = vld [vmem:[%s3] sm:$0xff]
  %v1424 = vld [vmem:[%s3 + $0x8] sm:$0xff]
  %v1425 = vld [vmem:[%s3 + $0x10] sm:$0xff]
  %v1426 = vld [vmem:[%s3 + $0x18] sm:$0xff]
  %v1427 = vld [vmem:[%s3 + $0x20] sm:$0x1]
  %v1428 = vperm.slane %v1427, 0
  %1433 = vrot.lane.b32.xlu0 %v1423, 20
  %v1434 = vpop.permute.xlu0 %1433
  %1435 = vrot.lane.b32.xlu0 %v1424, 20
  %v1436 = vpop.permute.xlu0 %1435
  %1437 = vrot.lane.b32.xlu0 %v1425, 20
  %v1438 = vpop.permute.xlu0 %1437
  %1439 = vrot.lane.b32.xlu0 %v1426, 20
  %v1440 = vpop.permute.xlu0 %1439
  %1446 = vrot.lane.b32.xlu0 %v1428, 20
  %v1447 = vpop.permute.xlu0 %1446
  %v1450 = vsel %vm1104, %v1421, 0
  %v1453 = vsel %vm1104, %v1422, 0
  %1455 = vmatpush.msra.mxu0 0.0
  %1456 = vmatpush.msra.mxu0 0.0
  %1457 = vmatpush.msra.mxu0 0.0
  %1458 = vmatpush.msra.mxu0 0.0
  %1459 = vmatpush.msra.mxu0 0.0
  %1460 = vmatpush.msra.mxu0 0.0
  %1461 = vmatpush.msra.mxu0 0.0
  %1462 = vmatpush.msra.mxu0 0.0
  %1463 = vmatpush.msra.mxu0 0.0
  %1464 = vmatpush.msra.mxu0 0.0
  %1465 = vmatpush.msra.mxu0 0.0
  %1466 = vmatpush.msra.mxu0 0.0
  %1467 = vmatpush.msra.mxu0 %v1440
  %1468 = vmatpush.msra.mxu0 %v1438
  %1469 = vmatpush.msra.mxu0 %v1436
  %1470 = vmatpush.msra.mxu0 %v1434
  %1471 = vmatmul.f32.gmra.mxu0 %v1450
  %v1472 = vpop.f32.mrf.mxu0
  %v1473 = vadd.f32 %v1447, %v1472
  %1474 = vmatmul.f32.gmra.mxu0 %v1453
  %v1475 = vpop.f32.mrf.mxu0
  %v1476 = vadd.f32 %v1447, %v1475
  %1477 = vdwg.mxu0
  %v1478 = vsel %vm973, %v1473, -inf
  %1479 = vmax.xlane.f32.xlu0 %v1478
  %v1480 = vpop.xlane.xlu0 %1479
  %v1481 = vsel %vm973, %v1476, -inf
  %1482 = vmax.xlane.f32.xlu0 %v1481
  %v1483 = vpop.xlane.xlu0 %1482
  %v1484 = vsub.f32 %v1473, %v1480
  %v1485 = vsub.f32 %v1476, %v1483
  %v1486 = vmul.f32 %v1484, 1.442695
  %v1487 = vpow.pop %v1486
  %v1488 = vmul.f32 %v1485, 1.442695
  %v1489 = vpow.pop %v1488
  %v1490 = vsel %vm973, %v1487, 0.0
  %1491 = vadd.xlane.f32.xlu0 %v1490
  %v1492 = vpop.xlane.xlu0 %1491
  %v1493 = vsel %vm973, %v1489, 0.0
  %1494 = vadd.xlane.f32.xlu0 %v1493
  %v1495 = vpop.xlane.xlu0 %1494
  %v1496 = vlog2.pop %v1492
  %v1497 = vmul.f32 %v1496, 0.6931472
  %v1498 = vlog2.pop %v1495
  %v1499 = vmul.f32 %v1498, 0.6931472
  %v1500 = vadd.f32 %v1480, %v1497
  %v1501 = vadd.f32 %v1483, %v1499
  %v1502 = vsub.f32 %v1473, %v1500
  %v1503 = vsub.f32 %v1476, %v1501
  %v1504 = vadd.s32 %v827, 8
  %v1505 = vadd.s32 %v827, 16
  %vm1506 = vcmp.eq.s32.totalorder %v632, %v1504
  %vm1507 = vcmp.eq.s32.totalorder %v632, %v1505
  %v1508 = vsel %vm1506, 1, 0
  %v1509 = vsel %vm1507, 1, 0
  %v1510 = vcvt.s32.f32 %v1508
  %v1511 = vcvt.s32.f32 %v1509
  %vm1512 = vcmask 162816
  %v1514 = vsel %vm1512, %v1126, 0
  %v1517 = vsel %vm59, %v1511, 0
  %1519 = vmatpush.msra.mxu0 0.0
  %1520 = vmatpush.msra.mxu0 0.0
  %1521 = vmatpush.msra.mxu0 0.0
  %1522 = vmatpush.msra.mxu0 0.0
  %1523 = vmatpush.msra.mxu0 0.0
  %1524 = vmatpush.msra.mxu0 0.0
  %1525 = vmatpush.msra.mxu0 0.0
  %1526 = vmatpush.msra.mxu0 0.0
  %1527 = vmatpush.msra.mxu0 0.0
  %1528 = vmatpush.msra.mxu0 0.0
  %1529 = vmatpush.msra.mxu0 0.0
  %1530 = vmatpush.msra.mxu0 0.0
  %1531 = vmatpush.msra.mxu0 0.0
  %1532 = vmatpush.msra.mxu0 %v1517
  %1533 = vmatpush.msra.mxu0 %v1510
  %1534 = vmatpush.msra.mxu0 %v836
  %1535 = vmatmul.f32.gmra.mxu0 %v1514
  %v1536 = vpop.f32.mrf.mxu0
  %v1537 = vadd.f32 0.0, %v1536
  %1538 = vdwg.mxu0
  %v1540 = vsel %vm973, %v1502, 0
  %v1543 = vsel %vm973, %v1503, 0
  %1545 = vmatpush.msra.mxu0 0.0
  %1546 = vmatpush.msra.mxu0 0.0
  %1547 = vmatpush.msra.mxu0 0.0
  %1548 = vmatpush.msra.mxu0 0.0
  %1549 = vmatpush.msra.mxu0 0.0
  %1550 = vmatpush.msra.mxu0 0.0
  %1551 = vmatpush.msra.mxu0 0.0
  %1552 = vmatpush.msra.mxu0 0.0
  %1553 = vmatpush.msra.mxu0 0.0
  %1554 = vmatpush.msra.mxu0 0.0
  %1555 = vmatpush.msra.mxu0 0.0
  %1556 = vmatpush.msra.mxu0 0.0
  %1557 = vmatpush.msra.mxu0 0.0
  %1558 = vmatpush.msra.mxu0 0.0
  %1559 = vmatpush.msra.mxu0 0.0
  %1560 = vmatpush.msra.mxu0 %v836
  %1561 = vmatmul.f32.gmra.mxu0 %v1540
  %v1562 = vpop.f32.mrf.mxu0
  %v1563 = vadd.f32 0.0, %v1562
  %1564 = vmatmul.f32.gmra.mxu0 %v1543
  %v1565 = vpop.f32.mrf.mxu0
  %v1566 = vadd.f32 0.0, %v1565
  %1567 = vdwg.mxu0
  %1568 = vst [vmem:[%s4] sm:$0xff] %v1537
  %1569 = vst [vmem:[%s4 + $0x8] sm:$0xff] %v1563
  %1570 = vst [vmem:[%s4 + $0x10] sm:$0xff] %v1566
  // Predicated region
  $region18: #{sgfn_forward.1} parent=0 // pred_check
    _
  $region19: #{sgfn_forward.1} parent=0 // pred_check_branch
    %1572 = sbr.rel (0) target = $region21
  $region20: #{sgfn_forward.1} parent=0 // pred_region
    _
  $region21: #{sgfn_forward.1} parent=0 // pred_fallthru
    _
  // Predicated region
  $region22: #{sgfn_forward.1} parent=0 // pred_check
    _
  $region23: #{sgfn_forward.1} parent=0 // pred_check_branch
    %1574 = sbr.rel (0) target = $region25
  $region24: #{sgfn_forward.1} parent=0 // pred_region
    _
  $region25: #{sgfn_forward.1} parent=0 // pred_fallthru
    _

</llo_original>
